<compile_context>
chip_gen: v7x
topology: tpu7x:2x2x1
jax: 0.10.0
libtpu: 0.0.40
codegen_flags: <defaults>
</compile_context>

<pallas_src>
import jax
import jax.numpy as jnp
import numpy as np
from jax import lax
from jax.experimental import pallas as pl
from jax.experimental.pallas import tpu as pltpu


# ------------------------------- fused kernel ------------------------------- #

def _mish(x):
    # x * tanh(softplus(x)).  Stable softplus: max(x, 0) + log(1 + exp(-|x|)).
    sp = jnp.maximum(x, 0.0) + jnp.log(1.0 + jnp.exp(-jnp.abs(x)))
    return x * jnp.tanh(sp)


def make_encoder_kernel(louts, batch):
    """Single fused kernel: 4x(conv+BN+Mish) -> FC -> reg, all matmul/elementwise."""
    n_layers = len(louts)
    per = 5  # refs per conv layer: Wmat, bias_f, gamma_f, beta_f, P

    def kernel(*refs):
        x_ref = refs[0]
        layer_refs = [refs[1 + per * i: 1 + per * (i + 1)] for i in range(n_layers)]
        wfc_ref = refs[1 + per * n_layers]
        bfc_ref = refs[2 + per * n_layers]
        z_ref = refs[3 + per * n_layers]
        reg_ref = refs[4 + per * n_layers]

        h = x_ref[...]                                   # (B, F0) length-major flatten
        for lout, (w_ref, b_ref, g_ref, be_ref, p_ref) in zip(louts, layer_refs):
            # Conv1d(k=3, s=2, p=1) as a single dense matmul on the flattened layout.
            pre = jnp.dot(h, w_ref[...],
                          preferred_element_type=jnp.float32) + b_ref[...]   # (B, F)

            # BatchNorm1d, training-mode batch stats (biased variance), eps=1e-5.
            colsum1 = jnp.sum(pre, axis=0, keepdims=True)          # (1, F)
            colsum2 = jnp.sum(pre * pre, axis=0, keepdims=True)    # (1, F)
            inv_n = 1.0 / float(batch * lout)
            # P projects per-feature sums onto per-channel sums, replicated back to F.
            mean_f = jnp.dot(colsum1, p_ref[...],
                             preferred_element_type=jnp.float32) * inv_n
            ex2_f = jnp.dot(colsum2, p_ref[...],
                            preferred_element_type=jnp.float32) * inv_n
            var_f = ex2_f - mean_f * mean_f
            scale_f = g_ref[...] * lax.rsqrt(var_f + 1e-5)
            shift_f = be_ref[...] - mean_f * scale_f

            h = _mish(pre * scale_f + shift_f)                      # (B, F)

        # FC head (+ permuted weight handles torch's channel-major flatten) + reg.
        z = jnp.dot(h, wfc_ref[...],
                    preferred_element_type=jnp.float32) + bfc_ref[...]
        z_ref[...] = z
        zsq = jnp.sum(z * z, axis=1, keepdims=True)                 # (B, 1)
        reg_ref[...] = jnp.sum(zsq, axis=0, keepdims=True)          # (1, 1)

    return kernel


# ------------------------------ forward wrapper ------------------------------ #

def encoder_forward(x, conv_params, fc_params):
    """Fused Pallas forward.  x: (B, input_dim, input_channel) float32.
    Returns (z, reg) with z: (B, latent) and reg = sum(z**2), as Encoder.forward."""
    if x.dtype != jnp.float32:
        x = x.astype(jnp.float32)
    batch, input_dim, input_channel = x.shape
    # (B, L, C) row-major flatten == length-major feature index l*C + c.
    x_flat = x.reshape(batch, input_dim * input_channel)

    # Static per-layer output lengths (k=3, s=2, p=1  =>  Lout = (Lin - 1)//2 + 1).
    louts, length = [], input_dim
    for _ in conv_params:
        length = (length - 1) // 2 + 1
        louts.append(length)

    wfc, bfc = fc_params
    latent = wfc.shape[1]

    inputs = [x_flat]
    for p in conv_params:
        inputs.extend(p)
    inputs.extend([wfc, bfc])

    z, reg = pl.pallas_call(
        make_encoder_kernel(tuple(louts), batch),
        out_shape=(jax.ShapeDtypeStruct((batch, latent), jnp.float32),
                   jax.ShapeDtypeStruct((1, 1), jnp.float32)),
    )(*inputs)
    return z, reg[0, 0]


# -------------------------- params (torch layout) ---------------------------- #

def init_params(key, input_dim=88, input_channel=1, latent_dim=16,
                h_channels=(2, 4, 8, 16)):
    """Parameters in PyTorch layout (Conv1d: (Cout, Cin, K); Linear: (latent, in))."""
    chans = [input_channel] + list(h_channels)
    conv, bn = [], []
    length = input_dim
    for i in range(len(chans) - 1):
        cin, cout = chans[i], chans[i + 1]
        key, k1, k2 = jax.random.split(key, 3)
        bound = 1.0 / float(cin * 3) ** 0.5
        w = jax.random.uniform(k1, (cout, cin, 3), jnp.float32, -bound, bound)
        b = jax.random.uniform(k2, (cout,), jnp.float32, -bound, bound)
        conv.append((w, b))
        bn.append((jnp.ones((cout,), jnp.float32), jnp.zeros((cout,), jnp.float32)))
        length = (length + 2 * 1 - 3) // 2 + 1
    conv_out = chans[-1] * length
    key, k1, k2 = jax.random.split(key, 3)
    bound = 1.0 / float(conv_out) ** 0.5
    fcw = jax.random.uniform(k1, (latent_dim, conv_out), jnp.float32, -bound, bound)
    fcb = jax.random.uniform(k2, (latent_dim,), jnp.float32, -bound, bound)
    return {"conv": conv, "bn": bn, "fc": (fcw, fcb)}


def prepare_params(params, input_dim=88, input_channel=1):
    """One-time (outside jit) lowering of PyTorch parameters into kernel operands."""
    conv_prep = []
    length, cin = input_dim, input_channel
    for (w, b), (g, beta) in zip(params["conv"], params["bn"]):
        w = np.asarray(w, np.float32)
        b = np.asarray(b, np.float32)
        g = np.asarray(g, np.float32)
        beta = np.asarray(beta, np.float32)
        cout = w.shape[0]
        lout = (length + 2 - 3) // 2 + 1

        # Conv-as-matrix on length-major flattened features:
        #   Wmat[li*Cin + ci, lo*Cout + co] = w[co, ci, kk] with li = 2*lo + kk - 1.
        wmat = np.zeros((length * cin, lout * cout), np.float32)
        for lo in range(lout):
            for kk in range(3):
                li = 2 * lo + kk - 1
                if 0 <= li < length:
                    wmat[li * cin:(li + 1) * cin,
                         lo * cout:(lo + 1) * cout] = w[:, :, kk].T
        bias_f = np.tile(b, lout).reshape(1, lout * cout)
        gamma_f = np.tile(g, lout).reshape(1, lout * cout)
        beta_f = np.tile(beta, lout).reshape(1, lout * cout)
        # Channel projection: P[f, f'] = 1 iff f and f' belong to the same channel.
        pmat = np.tile(np.eye(cout, dtype=np.float32), (lout, lout))

        conv_prep.append((jnp.asarray(wmat), jnp.asarray(bias_f),
                          jnp.asarray(gamma_f), jnp.asarray(beta_f),
                          jnp.asarray(pmat)))
        length, cin = lout, cout

    fcw, fcb = params["fc"]
    latent = fcw.shape[0]
    c_last, l_last = cin, length
    # torch flattens (B, C, L) channel-major; the kernel flattens length-major, so
    # permute the FC weight once: Wfc[l*C + c, d] = fcw[d, c*L + l].
    wfc = jnp.transpose(jnp.reshape(fcw, (latent, c_last, l_last)),
                        (2, 1, 0)).reshape(l_last * c_last, latent)
    return tuple(conv_prep), (wfc, jnp.reshape(fcb, (1, latent)))


# ------------------------------ pure-JAX reference --------------------------- #

def encoder_reference(x, params):
    """Plain XLA reference of Encoder.forward (training-mode BN) for validation."""
    h = jnp.moveaxis(x, -1, -2).astype(jnp.float32)          # (B, C, L)
    for (w, b), (g, beta) in zip(params["conv"], params["bn"]):
        h = lax.conv_general_dilated(
            h, w, window_strides=(2,), padding=[(1, 1)],
            dimension_numbers=("NCH", "OIH", "NCH"),
            precision=lax.Precision.HIGHEST) + b[None, :, None]
        mean = jnp.mean(h, axis=(0, 2), keepdims=True)
        var = jnp.mean((h - mean) ** 2, axis=(0, 2), keepdims=True)
        h = (h - mean) * lax.rsqrt(var + 1e-5) * g[None, :, None] + beta[None, :, None]
        h = h * jnp.tanh(jax.nn.softplus(h))
    flat = h.reshape(h.shape[0], -1)
    fcw, fcb = params["fc"]
    z = jnp.dot(flat, fcw.T, precision=lax.Precision.HIGHEST) + fcb
    return z, jnp.sum(z ** 2)


if __name__ == "__main__":
    key = jax.random.PRNGKey(0)
    kp, kx = jax.random.split(key)
    params = init_params(kp)                           # input_dim=88, latent_dim=16
    conv_p, fc_p = prepare_params(params)              # one-time kernel-layout prep
    x = jax.random.normal(kx, (2, 88, 1), jnp.float32) # (B, L, C) as the module expects

    fwd = jax.jit(encoder_forward)
    z, reg = fwd(x, conv_p, fc_p)
    jax.block_until_ready((z, reg))

    z_ref, reg_ref = encoder_reference(x, params)
    assert z.shape == (2, 16) and reg.shape == ()
    assert bool(jnp.all(jnp.isfinite(z))) and bool(jnp.isfinite(reg))
    assert bool(jnp.allclose(z, z_ref, rtol=2e-2, atol=2e-2)), "z mismatch vs reference"
    assert bool(jnp.allclose(reg, reg_ref, rtol=2e-2, atol=2e-2)), "reg mismatch vs reference"
    print("KERNEL_OK")
</pallas_src>

<mosaic_0001>
module attributes {stable_mosaic.version = 11 : i64} {
  func.func @kernel(%arg0: memref<2x88xf32, #tpu.memory_space<vmem>>, %arg1: memref<88x88xf32, #tpu.memory_space<vmem>>, %arg2: memref<1x88xf32, #tpu.memory_space<vmem>>, %arg3: memref<1x88xf32, #tpu.memory_space<vmem>>, %arg4: memref<1x88xf32, #tpu.memory_space<vmem>>, %arg5: memref<88x88xf32, #tpu.memory_space<vmem>>, %arg6: memref<88x88xf32, #tpu.memory_space<vmem>>, %arg7: memref<1x88xf32, #tpu.memory_space<vmem>>, %arg8: memref<1x88xf32, #tpu.memory_space<vmem>>, %arg9: memref<1x88xf32, #tpu.memory_space<vmem>>, %arg10: memref<88x88xf32, #tpu.memory_space<vmem>>, %arg11: memref<88x88xf32, #tpu.memory_space<vmem>>, %arg12: memref<1x88xf32, #tpu.memory_space<vmem>>, %arg13: memref<1x88xf32, #tpu.memory_space<vmem>>, %arg14: memref<1x88xf32, #tpu.memory_space<vmem>>, %arg15: memref<88x88xf32, #tpu.memory_space<vmem>>, %arg16: memref<88x96xf32, #tpu.memory_space<vmem>>, %arg17: memref<1x96xf32, #tpu.memory_space<vmem>>, %arg18: memref<1x96xf32, #tpu.memory_space<vmem>>, %arg19: memref<1x96xf32, #tpu.memory_space<vmem>>, %arg20: memref<96x96xf32, #tpu.memory_space<vmem>>, %arg21: memref<96x16xf32, #tpu.memory_space<vmem>>, %arg22: memref<1x16xf32, #tpu.memory_space<vmem>>, %arg23: memref<2x16xf32, #tpu.memory_space<vmem>>, %arg24: memref<1x1xf32, #tpu.memory_space<vmem>>) attributes {dimension_semantics = [], scalar_prefetch = 0 : i64, scratch_operands = 0 : i64, tpu.core_type = #tpu.core_type<tc>} {
    %c0 = arith.constant 0 : index
    %c0_0 = arith.constant 0 : index
    %0 = vector.load %arg0[%c0, %c0_0] : memref<2x88xf32, #tpu.memory_space<vmem>>, vector<2x88xf32>
    %c0_1 = arith.constant 0 : index
    %c0_2 = arith.constant 0 : index
    %1 = vector.load %arg1[%c0_1, %c0_2] : memref<88x88xf32, #tpu.memory_space<vmem>>, vector<88x88xf32>
    %cst = arith.constant dense<0.000000e+00> : vector<2x88xf32>
    %2 = tpu.matmul %0, %1, %cst {dimension_numbers = #tpu.dot_dimension_numbers<[1], [0], [0], [1], [0, 0, 1, 1], [], []>} : vector<2x88xf32>, vector<88x88xf32>, vector<2x88xf32> -> vector<2x88xf32>
    %c0_3 = arith.constant 0 : index
    %c0_4 = arith.constant 0 : index
    %3 = vector.load %arg2[%c0_3, %c0_4] : memref<1x88xf32, #tpu.memory_space<vmem>>, vector<1x88xf32>
    %4 = vector.broadcast %3 : vector<1x88xf32> to vector<2x88xf32>
    %5 = arith.addf %2, %4 : vector<2x88xf32>
    %cst_5 = arith.constant dense<0.000000e+00> : vector<88xf32>
    %6 = vector.multi_reduction <add>, %5, %cst_5 [0] : vector<2x88xf32> to vector<88xf32>
    %7 = vector.shape_cast %6 : vector<88xf32> to vector<1x88xf32>
    %8 = arith.mulf %5, %5 : vector<2x88xf32>
    %cst_6 = arith.constant dense<0.000000e+00> : vector<88xf32>
    %9 = vector.multi_reduction <add>, %8, %cst_6 [0] : vector<2x88xf32> to vector<88xf32>
    %10 = vector.shape_cast %9 : vector<88xf32> to vector<1x88xf32>
    %c0_7 = arith.constant 0 : index
    %c0_8 = arith.constant 0 : index
    %11 = vector.load %arg5[%c0_7, %c0_8] : memref<88x88xf32, #tpu.memory_space<vmem>>, vector<88x88xf32>
    %cst_9 = arith.constant dense<0.000000e+00> : vector<1x88xf32>
    %12 = tpu.matmul %7, %11, %cst_9 {dimension_numbers = #tpu.dot_dimension_numbers<[1], [0], [0], [1], [0, 0, 1, 1], [], []>} : vector<1x88xf32>, vector<88x88xf32>, vector<1x88xf32> -> vector<1x88xf32>
    %cst_10 = arith.constant 0.0113636367 : f32
    %13 = vector.broadcast %cst_10 : f32 to vector<1x88xf32>
    %14 = arith.mulf %12, %13 : vector<1x88xf32>
    %c0_11 = arith.constant 0 : index
    %c0_12 = arith.constant 0 : index
    %15 = vector.load %arg5[%c0_11, %c0_12] : memref<88x88xf32, #tpu.memory_space<vmem>>, vector<88x88xf32>
    %cst_13 = arith.constant dense<0.000000e+00> : vector<1x88xf32>
    %16 = tpu.matmul %10, %15, %cst_13 {dimension_numbers = #tpu.dot_dimension_numbers<[1], [0], [0], [1], [0, 0, 1, 1], [], []>} : vector<1x88xf32>, vector<88x88xf32>, vector<1x88xf32> -> vector<1x88xf32>
    %cst_14 = arith.constant 0.0113636367 : f32
    %17 = vector.broadcast %cst_14 : f32 to vector<1x88xf32>
    %18 = arith.mulf %16, %17 : vector<1x88xf32>
    %19 = arith.mulf %14, %14 : vector<1x88xf32>
    %20 = arith.subf %18, %19 : vector<1x88xf32>
    %c0_15 = arith.constant 0 : index
    %c0_16 = arith.constant 0 : index
    %21 = vector.load %arg3[%c0_15, %c0_16] : memref<1x88xf32, #tpu.memory_space<vmem>>, vector<1x88xf32>
    %cst_17 = arith.constant 9.99999974E-6 : f32
    %22 = vector.broadcast %cst_17 : f32 to vector<1x88xf32>
    %23 = arith.addf %20, %22 : vector<1x88xf32>
    %24 = math.rsqrt %23 : vector<1x88xf32>
    %25 = arith.mulf %21, %24 : vector<1x88xf32>
    %c0_18 = arith.constant 0 : index
    %c0_19 = arith.constant 0 : index
    %26 = vector.load %arg4[%c0_18, %c0_19] : memref<1x88xf32, #tpu.memory_space<vmem>>, vector<1x88xf32>
    %27 = arith.mulf %14, %25 : vector<1x88xf32>
    %28 = arith.subf %26, %27 : vector<1x88xf32>
    %29 = vector.broadcast %25 : vector<1x88xf32> to vector<2x88xf32>
    %30 = arith.mulf %5, %29 : vector<2x88xf32>
    %31 = vector.broadcast %28 : vector<1x88xf32> to vector<2x88xf32>
    %32 = arith.addf %30, %31 : vector<2x88xf32>
    %cst_20 = arith.constant 0.000000e+00 : f32
    %33 = vector.broadcast %cst_20 : f32 to vector<2x88xf32>
    %34 = arith.maximumf %32, %33 : vector<2x88xf32>
    %35 = math.absf %32 : vector<2x88xf32>
    %cst_21 = arith.constant 0.000000e+00 : f32
    %36 = vector.broadcast %cst_21 : f32 to vector<2x88xf32>
    %37 = arith.subf %36, %35 : vector<2x88xf32>
    %38 = math.exp %37 : vector<2x88xf32>
    %cst_22 = arith.constant 1.000000e+00 : f32
    %39 = vector.broadcast %cst_22 : f32 to vector<2x88xf32>
    %40 = arith.addf %39, %38 : vector<2x88xf32>
    %41 = math.log %40 : vector<2x88xf32>
    %42 = arith.addf %34, %41 : vector<2x88xf32>
    %43 = math.tanh %42 : vector<2x88xf32>
    %44 = arith.mulf %32, %43 : vector<2x88xf32>
    %c0_23 = arith.constant 0 : index
    %c0_24 = arith.constant 0 : index
    %45 = vector.load %arg6[%c0_23, %c0_24] : memref<88x88xf32, #tpu.memory_space<vmem>>, vector<88x88xf32>
    %cst_25 = arith.constant dense<0.000000e+00> : vector<2x88xf32>
    %46 = tpu.matmul %44, %45, %cst_25 {dimension_numbers = #tpu.dot_dimension_numbers<[1], [0], [0], [1], [0, 0, 1, 1], [], []>} : vector<2x88xf32>, vector<88x88xf32>, vector<2x88xf32> -> vector<2x88xf32>
    %c0_26 = arith.constant 0 : index
    %c0_27 = arith.constant 0 : index
    %47 = vector.load %arg7[%c0_26, %c0_27] : memref<1x88xf32, #tpu.memory_space<vmem>>, vector<1x88xf32>
    %48 = vector.broadcast %47 : vector<1x88xf32> to vector<2x88xf32>
    %49 = arith.addf %46, %48 : vector<2x88xf32>
    %cst_28 = arith.constant dense<0.000000e+00> : vector<88xf32>
    %50 = vector.multi_reduction <add>, %49, %cst_28 [0] : vector<2x88xf32> to vector<88xf32>
    %51 = vector.shape_cast %50 : vector<88xf32> to vector<1x88xf32>
    %52 = arith.mulf %49, %49 : vector<2x88xf32>
    %cst_29 = arith.constant dense<0.000000e+00> : vector<88xf32>
    %53 = vector.multi_reduction <add>, %52, %cst_29 [0] : vector<2x88xf32> to vector<88xf32>
    %54 = vector.shape_cast %53 : vector<88xf32> to vector<1x88xf32>
    %c0_30 = arith.constant 0 : index
    %c0_31 = arith.constant 0 : index
    %55 = vector.load %arg10[%c0_30, %c0_31] : memref<88x88xf32, #tpu.memory_space<vmem>>, vector<88x88xf32>
    %cst_32 = arith.constant dense<0.000000e+00> : vector<1x88xf32>
    %56 = tpu.matmul %51, %55, %cst_32 {dimension_numbers = #tpu.dot_dimension_numbers<[1], [0], [0], [1], [0, 0, 1, 1], [], []>} : vector<1x88xf32>, vector<88x88xf32>, vector<1x88xf32> -> vector<1x88xf32>
    %cst_33 = arith.constant 0.0227272734 : f32
    %57 = vector.broadcast %cst_33 : f32 to vector<1x88xf32>
    %58 = arith.mulf %56, %57 : vector<1x88xf32>
    %c0_34 = arith.constant 0 : index
    %c0_35 = arith.constant 0 : index
    %59 = vector.load %arg10[%c0_34, %c0_35] : memref<88x88xf32, #tpu.memory_space<vmem>>, vector<88x88xf32>
    %cst_36 = arith.constant dense<0.000000e+00> : vector<1x88xf32>
    %60 = tpu.matmul %54, %59, %cst_36 {dimension_numbers = #tpu.dot_dimension_numbers<[1], [0], [0], [1], [0, 0, 1, 1], [], []>} : vector<1x88xf32>, vector<88x88xf32>, vector<1x88xf32> -> vector<1x88xf32>
    %cst_37 = arith.constant 0.0227272734 : f32
    %61 = vector.broadcast %cst_37 : f32 to vector<1x88xf32>
    %62 = arith.mulf %60, %61 : vector<1x88xf32>
    %63 = arith.mulf %58, %58 : vector<1x88xf32>
    %64 = arith.subf %62, %63 : vector<1x88xf32>
    %c0_38 = arith.constant 0 : index
    %c0_39 = arith.constant 0 : index
    %65 = vector.load %arg8[%c0_38, %c0_39] : memref<1x88xf32, #tpu.memory_space<vmem>>, vector<1x88xf32>
    %cst_40 = arith.constant 9.99999974E-6 : f32
    %66 = vector.broadcast %cst_40 : f32 to vector<1x88xf32>
    %67 = arith.addf %64, %66 : vector<1x88xf32>
    %68 = math.rsqrt %67 : vector<1x88xf32>
    %69 = arith.mulf %65, %68 : vector<1x88xf32>
    %c0_41 = arith.constant 0 : index
    %c0_42 = arith.constant 0 : index
    %70 = vector.load %arg9[%c0_41, %c0_42] : memref<1x88xf32, #tpu.memory_space<vmem>>, vector<1x88xf32>
    %71 = arith.mulf %58, %69 : vector<1x88xf32>
    %72 = arith.subf %70, %71 : vector<1x88xf32>
    %73 = vector.broadcast %69 : vector<1x88xf32> to vector<2x88xf32>
    %74 = arith.mulf %49, %73 : vector<2x88xf32>
    %75 = vector.broadcast %72 : vector<1x88xf32> to vector<2x88xf32>
    %76 = arith.addf %74, %75 : vector<2x88xf32>
    %cst_43 = arith.constant 0.000000e+00 : f32
    %77 = vector.broadcast %cst_43 : f32 to vector<2x88xf32>
    %78 = arith.maximumf %76, %77 : vector<2x88xf32>
    %79 = math.absf %76 : vector<2x88xf32>
    %cst_44 = arith.constant 0.000000e+00 : f32
    %80 = vector.broadcast %cst_44 : f32 to vector<2x88xf32>
    %81 = arith.subf %80, %79 : vector<2x88xf32>
    %82 = math.exp %81 : vector<2x88xf32>
    %cst_45 = arith.constant 1.000000e+00 : f32
    %83 = vector.broadcast %cst_45 : f32 to vector<2x88xf32>
    %84 = arith.addf %83, %82 : vector<2x88xf32>
    %85 = math.log %84 : vector<2x88xf32>
    %86 = arith.addf %78, %85 : vector<2x88xf32>
    %87 = math.tanh %86 : vector<2x88xf32>
    %88 = arith.mulf %76, %87 : vector<2x88xf32>
    %c0_46 = arith.constant 0 : index
    %c0_47 = arith.constant 0 : index
    %89 = vector.load %arg11[%c0_46, %c0_47] : memref<88x88xf32, #tpu.memory_space<vmem>>, vector<88x88xf32>
    %cst_48 = arith.constant dense<0.000000e+00> : vector<2x88xf32>
    %90 = tpu.matmul %88, %89, %cst_48 {dimension_numbers = #tpu.dot_dimension_numbers<[1], [0], [0], [1], [0, 0, 1, 1], [], []>} : vector<2x88xf32>, vector<88x88xf32>, vector<2x88xf32> -> vector<2x88xf32>
    %c0_49 = arith.constant 0 : index
    %c0_50 = arith.constant 0 : index
    %91 = vector.load %arg12[%c0_49, %c0_50] : memref<1x88xf32, #tpu.memory_space<vmem>>, vector<1x88xf32>
    %92 = vector.broadcast %91 : vector<1x88xf32> to vector<2x88xf32>
    %93 = arith.addf %90, %92 : vector<2x88xf32>
    %cst_51 = arith.constant dense<0.000000e+00> : vector<88xf32>
    %94 = vector.multi_reduction <add>, %93, %cst_51 [0] : vector<2x88xf32> to vector<88xf32>
    %95 = vector.shape_cast %94 : vector<88xf32> to vector<1x88xf32>
    %96 = arith.mulf %93, %93 : vector<2x88xf32>
    %cst_52 = arith.constant dense<0.000000e+00> : vector<88xf32>
    %97 = vector.multi_reduction <add>, %96, %cst_52 [0] : vector<2x88xf32> to vector<88xf32>
    %98 = vector.shape_cast %97 : vector<88xf32> to vector<1x88xf32>
    %c0_53 = arith.constant 0 : index
    %c0_54 = arith.constant 0 : index
    %99 = vector.load %arg15[%c0_53, %c0_54] : memref<88x88xf32, #tpu.memory_space<vmem>>, vector<88x88xf32>
    %cst_55 = arith.constant dense<0.000000e+00> : vector<1x88xf32>
    %100 = tpu.matmul %95, %99, %cst_55 {dimension_numbers = #tpu.dot_dimension_numbers<[1], [0], [0], [1], [0, 0, 1, 1], [], []>} : vector<1x88xf32>, vector<88x88xf32>, vector<1x88xf32> -> vector<1x88xf32>
    %cst_56 = arith.constant 0.0454545468 : f32
    %101 = vector.broadcast %cst_56 : f32 to vector<1x88xf32>
    %102 = arith.mulf %100, %101 : vector<1x88xf32>
    %c0_57 = arith.constant 0 : index
    %c0_58 = arith.constant 0 : index
    %103 = vector.load %arg15[%c0_57, %c0_58] : memref<88x88xf32, #tpu.memory_space<vmem>>, vector<88x88xf32>
    %cst_59 = arith.constant dense<0.000000e+00> : vector<1x88xf32>
    %104 = tpu.matmul %98, %103, %cst_59 {dimension_numbers = #tpu.dot_dimension_numbers<[1], [0], [0], [1], [0, 0, 1, 1], [], []>} : vector<1x88xf32>, vector<88x88xf32>, vector<1x88xf32> -> vector<1x88xf32>
    %cst_60 = arith.constant 0.0454545468 : f32
    %105 = vector.broadcast %cst_60 : f32 to vector<1x88xf32>
    %106 = arith.mulf %104, %105 : vector<1x88xf32>
    %107 = arith.mulf %102, %102 : vector<1x88xf32>
    %108 = arith.subf %106, %107 : vector<1x88xf32>
    %c0_61 = arith.constant 0 : index
    %c0_62 = arith.constant 0 : index
    %109 = vector.load %arg13[%c0_61, %c0_62] : memref<1x88xf32, #tpu.memory_space<vmem>>, vector<1x88xf32>
    %cst_63 = arith.constant 9.99999974E-6 : f32
    %110 = vector.broadcast %cst_63 : f32 to vector<1x88xf32>
    %111 = arith.addf %108, %110 : vector<1x88xf32>
    %112 = math.rsqrt %111 : vector<1x88xf32>
    %113 = arith.mulf %109, %112 : vector<1x88xf32>
    %c0_64 = arith.constant 0 : index
    %c0_65 = arith.constant 0 : index
    %114 = vector.load %arg14[%c0_64, %c0_65] : memref<1x88xf32, #tpu.memory_space<vmem>>, vector<1x88xf32>
    %115 = arith.mulf %102, %113 : vector<1x88xf32>
    %116 = arith.subf %114, %115 : vector<1x88xf32>
    %117 = vector.broadcast %113 : vector<1x88xf32> to vector<2x88xf32>
    %118 = arith.mulf %93, %117 : vector<2x88xf32>
    %119 = vector.broadcast %116 : vector<1x88xf32> to vector<2x88xf32>
    %120 = arith.addf %118, %119 : vector<2x88xf32>
    %cst_66 = arith.constant 0.000000e+00 : f32
    %121 = vector.broadcast %cst_66 : f32 to vector<2x88xf32>
    %122 = arith.maximumf %120, %121 : vector<2x88xf32>
    %123 = math.absf %120 : vector<2x88xf32>
    %cst_67 = arith.constant 0.000000e+00 : f32
    %124 = vector.broadcast %cst_67 : f32 to vector<2x88xf32>
    %125 = arith.subf %124, %123 : vector<2x88xf32>
    %126 = math.exp %125 : vector<2x88xf32>
    %cst_68 = arith.constant 1.000000e+00 : f32
    %127 = vector.broadcast %cst_68 : f32 to vector<2x88xf32>
    %128 = arith.addf %127, %126 : vector<2x88xf32>
    %129 = math.log %128 : vector<2x88xf32>
    %130 = arith.addf %122, %129 : vector<2x88xf32>
    %131 = math.tanh %130 : vector<2x88xf32>
    %132 = arith.mulf %120, %131 : vector<2x88xf32>
    %c0_69 = arith.constant 0 : index
    %c0_70 = arith.constant 0 : index
    %133 = vector.load %arg16[%c0_69, %c0_70] : memref<88x96xf32, #tpu.memory_space<vmem>>, vector<88x96xf32>
    %cst_71 = arith.constant dense<0.000000e+00> : vector<2x96xf32>
    %134 = tpu.matmul %132, %133, %cst_71 {dimension_numbers = #tpu.dot_dimension_numbers<[1], [0], [0], [1], [0, 0, 1, 1], [], []>} : vector<2x88xf32>, vector<88x96xf32>, vector<2x96xf32> -> vector<2x96xf32>
    %c0_72 = arith.constant 0 : index
    %c0_73 = arith.constant 0 : index
    %135 = vector.load %arg17[%c0_72, %c0_73] : memref<1x96xf32, #tpu.memory_space<vmem>>, vector<1x96xf32>
    %136 = vector.broadcast %135 : vector<1x96xf32> to vector<2x96xf32>
    %137 = arith.addf %134, %136 : vector<2x96xf32>
    %cst_74 = arith.constant dense<0.000000e+00> : vector<96xf32>
    %138 = vector.multi_reduction <add>, %137, %cst_74 [0] : vector<2x96xf32> to vector<96xf32>
    %139 = vector.shape_cast %138 : vector<96xf32> to vector<1x96xf32>
    %140 = arith.mulf %137, %137 : vector<2x96xf32>
    %cst_75 = arith.constant dense<0.000000e+00> : vector<96xf32>
    %141 = vector.multi_reduction <add>, %140, %cst_75 [0] : vector<2x96xf32> to vector<96xf32>
    %142 = vector.shape_cast %141 : vector<96xf32> to vector<1x96xf32>
    %c0_76 = arith.constant 0 : index
    %c0_77 = arith.constant 0 : index
    %143 = vector.load %arg20[%c0_76, %c0_77] : memref<96x96xf32, #tpu.memory_space<vmem>>, vector<96x96xf32>
    %cst_78 = arith.constant dense<0.000000e+00> : vector<1x96xf32>
    %144 = tpu.matmul %139, %143, %cst_78 {dimension_numbers = #tpu.dot_dimension_numbers<[1], [0], [0], [1], [0, 0, 1, 1], [], []>} : vector<1x96xf32>, vector<96x96xf32>, vector<1x96xf32> -> vector<1x96xf32>
    %cst_79 = arith.constant 0.0833333358 : f32
    %145 = vector.broadcast %cst_79 : f32 to vector<1x96xf32>
    %146 = arith.mulf %144, %145 : vector<1x96xf32>
    %c0_80 = arith.constant 0 : index
    %c0_81 = arith.constant 0 : index
    %147 = vector.load %arg20[%c0_80, %c0_81] : memref<96x96xf32, #tpu.memory_space<vmem>>, vector<96x96xf32>
    %cst_82 = arith.constant dense<0.000000e+00> : vector<1x96xf32>
    %148 = tpu.matmul %142, %147, %cst_82 {dimension_numbers = #tpu.dot_dimension_numbers<[1], [0], [0], [1], [0, 0, 1, 1], [], []>} : vector<1x96xf32>, vector<96x96xf32>, vector<1x96xf32> -> vector<1x96xf32>
    %cst_83 = arith.constant 0.0833333358 : f32
    %149 = vector.broadcast %cst_83 : f32 to vector<1x96xf32>
    %150 = arith.mulf %148, %149 : vector<1x96xf32>
    %151 = arith.mulf %146, %146 : vector<1x96xf32>
    %152 = arith.subf %150, %151 : vector<1x96xf32>
    %c0_84 = arith.constant 0 : index
    %c0_85 = arith.constant 0 : index
    %153 = vector.load %arg18[%c0_84, %c0_85] : memref<1x96xf32, #tpu.memory_space<vmem>>, vector<1x96xf32>
    %cst_86 = arith.constant 9.99999974E-6 : f32
    %154 = vector.broadcast %cst_86 : f32 to vector<1x96xf32>
    %155 = arith.addf %152, %154 : vector<1x96xf32>
    %156 = math.rsqrt %155 : vector<1x96xf32>
    %157 = arith.mulf %153, %156 : vector<1x96xf32>
    %c0_87 = arith.constant 0 : index
    %c0_88 = arith.constant 0 : index
    %158 = vector.load %arg19[%c0_87, %c0_88] : memref<1x96xf32, #tpu.memory_space<vmem>>, vector<1x96xf32>
    %159 = arith.mulf %146, %157 : vector<1x96xf32>
    %160 = arith.subf %158, %159 : vector<1x96xf32>
    %161 = vector.broadcast %157 : vector<1x96xf32> to vector<2x96xf32>
    %162 = arith.mulf %137, %161 : vector<2x96xf32>
    %163 = vector.broadcast %160 : vector<1x96xf32> to vector<2x96xf32>
    %164 = arith.addf %162, %163 : vector<2x96xf32>
    %cst_89 = arith.constant 0.000000e+00 : f32
    %165 = vector.broadcast %cst_89 : f32 to vector<2x96xf32>
    %166 = arith.maximumf %164, %165 : vector<2x96xf32>
    %167 = math.absf %164 : vector<2x96xf32>
    %cst_90 = arith.constant 0.000000e+00 : f32
    %168 = vector.broadcast %cst_90 : f32 to vector<2x96xf32>
    %169 = arith.subf %168, %167 : vector<2x96xf32>
    %170 = math.exp %169 : vector<2x96xf32>
    %cst_91 = arith.constant 1.000000e+00 : f32
    %171 = vector.broadcast %cst_91 : f32 to vector<2x96xf32>
    %172 = arith.addf %171, %170 : vector<2x96xf32>
    %173 = math.log %172 : vector<2x96xf32>
    %174 = arith.addf %166, %173 : vector<2x96xf32>
    %175 = math.tanh %174 : vector<2x96xf32>
    %176 = arith.mulf %164, %175 : vector<2x96xf32>
    %c0_92 = arith.constant 0 : index
    %c0_93 = arith.constant 0 : index
    %177 = vector.load %arg21[%c0_92, %c0_93] : memref<96x16xf32, #tpu.memory_space<vmem>>, vector<96x16xf32>
    %cst_94 = arith.constant dense<0.000000e+00> : vector<2x16xf32>
    %178 = tpu.matmul %176, %177, %cst_94 {dimension_numbers = #tpu.dot_dimension_numbers<[1], [0], [0], [1], [0, 0, 1, 1], [], []>} : vector<2x96xf32>, vector<96x16xf32>, vector<2x16xf32> -> vector<2x16xf32>
    %c0_95 = arith.constant 0 : index
    %c0_96 = arith.constant 0 : index
    %179 = vector.load %arg22[%c0_95, %c0_96] : memref<1x16xf32, #tpu.memory_space<vmem>>, vector<1x16xf32>
    %180 = vector.broadcast %179 : vector<1x16xf32> to vector<2x16xf32>
    %181 = arith.addf %178, %180 : vector<2x16xf32>
    %c0_97 = arith.constant 0 : index
    %c0_98 = arith.constant 0 : index
    %182 = vector.load %arg23[%c0_97, %c0_98] : memref<2x16xf32, #tpu.memory_space<vmem>>, vector<2x16xf32>
    tpu.vector_store %arg23[%c0_97, %c0_98], %181 {strides = array<i32>} : memref<2x16xf32, #tpu.memory_space<vmem>>, vector<2x16xf32>,
    %183 = arith.mulf %181, %181 : vector<2x16xf32>
    %cst_99 = arith.constant dense<0.000000e+00> : vector<2xf32>
    %184 = vector.multi_reduction <add>, %183, %cst_99 [1] : vector<2x16xf32> to vector<2xf32>
    %185 = vector.shape_cast %184 : vector<2xf32> to vector<2x1xf32>
    %cst_100 = arith.constant dense<0.000000e+00> : vector<1xf32>
    %186 = vector.multi_reduction <add>, %185, %cst_100 [0] : vector<2x1xf32> to vector<1xf32>
    %187 = vector.shape_cast %186 : vector<1xf32> to vector<1x1xf32>
    %c0_101 = arith.constant 0 : index
    %c0_102 = arith.constant 0 : index
    %188 = vector.load %arg24[%c0_101, %c0_102] : memref<1x1xf32, #tpu.memory_space<vmem>>, vector<1x1xf32>
    tpu.vector_store %arg24[%c0_101, %c0_102], %187 {strides = array<i32>} : memref<1x1xf32, #tpu.memory_space<vmem>>, vector<1x1xf32>,
    return
  }
}

</mosaic_0001>

<llo_original>
// kernel: encoder_forward.1
$region0: #{encoder_forward.1}
  #allocation0 [shape = 'u32[]', space=smem, size = 0x4, offset = 0x4, fixed_abs, tag = 'smem constant byte address 0x4 - core index']
  #allocation1 [shape = 'u32[144,128]{1,0:T(1,128)}', space=vmem, size = 0x12000, scoped, tag = 'internal scratch']
  %s0 = inlined_call_operand.vmem [shape: f32[2,88], index: 0, kind: input, shape index: {}]
  %s1 = inlined_call_operand.vmem [shape: f32[88,88], index: 1, kind: input, shape index: {}]
  %s2 = inlined_call_operand.vmem [shape: f32[1,88], index: 2, kind: input, shape index: {}]
  %s3 = inlined_call_operand.vmem [shape: f32[1,88], index: 3, kind: input, shape index: {}]
  %s4 = inlined_call_operand.vmem [shape: f32[1,88], index: 4, kind: input, shape index: {}]
  %s5 = inlined_call_operand.hbm [shape: f32[88,88], index: 5, kind: input, shape index: {}]
  %s6 = inlined_call_operand.hbm [shape: f32[88,88], index: 6, kind: input, shape index: {}]
  %s7 = inlined_call_operand.vmem [shape: f32[1,88], index: 7, kind: input, shape index: {}]
  %s8 = inlined_call_operand.vmem [shape: f32[1,88], index: 8, kind: input, shape index: {}]
  %s9 = inlined_call_operand.hbm [shape: f32[1,88], index: 9, kind: input, shape index: {}]
  %s10 = inlined_call_operand.hbm [shape: f32[88,88], index: 10, kind: input, shape index: {}]
  %s11 = inlined_call_operand.hbm [shape: f32[88,88], index: 11, kind: input, shape index: {}]
  %s12 = inlined_call_operand.hbm [shape: f32[1,88], index: 12, kind: input, shape index: {}]
  %s13 = inlined_call_operand.hbm [shape: f32[1,88], index: 13, kind: input, shape index: {}]
  %s14 = inlined_call_operand.hbm [shape: f32[1,88], index: 14, kind: input, shape index: {}]
  %s15 = inlined_call_operand.hbm [shape: f32[88,88], index: 15, kind: input, shape index: {}]
  %s16 = inlined_call_operand.hbm [shape: f32[88,96], index: 16, kind: input, shape index: {}]
  %s17 = inlined_call_operand.hbm [shape: f32[1,96], index: 17, kind: input, shape index: {}]
  %s18 = inlined_call_operand.hbm [shape: f32[1,96], index: 18, kind: input, shape index: {}]
  %s19 = inlined_call_operand.hbm [shape: f32[1,96], index: 19, kind: input, shape index: {}]
  %s20 = inlined_call_operand.vmem [shape: f32[96,96], index: 20, kind: input, shape index: {}]
  %s21 = inlined_call_operand.vmem [shape: f32[96,16], index: 21, kind: input, shape index: {}]
  %s22 = inlined_call_operand.vmem [shape: f32[1,16], index: 22, kind: input, shape index: {}]
  %s23 = inlined_call_operand.hbm [shape: f32[2,16], index: 23, kind: output, shape index: {0}]
  %s24 = inlined_call_operand.hbm [shape: f32[1,1], index: 24, kind: output, shape index: {1}]
  %25 = xla_tuple %s23, %s24
  %s26 = sld [smem:[#allocation0]]
  $region162: #{encoder_forward.1} parent=0
    _
  %s28 = ssub.s32 1, %s26
  %s29 = scalar_select 0, %s28, %s26
  $region1: #{encoder_forward.1} parent=0
    #allocation2 [shape = 'u8[45056]{0}', space=vmem, size = 0xb000, scoped, tag = 'input window, operand 5, single buffered']
    #allocation3 [shape = 's32[1]{0}', space=sflag, size = 0x4, scoped, tag = 'scoped memory for encoder_forward.1']
    #allocation4 [shape = 's32[1]{0}', space=sflag, size = 0x4, scoped, tag = 'scoped memory for encoder_forward.1']
    #allocation5 [shape = 'u8[45056]{0}', space=vmem, size = 0xb000, scoped, tag = 'input window, operand 6, single buffered']
    #allocation6 [shape = 's32[1]{0}', space=sflag, size = 0x4, scoped, tag = 'scoped memory for encoder_forward.1']
    #allocation7 [shape = 'u8[512]{0}', space=vmem, size = 0x400, scoped, tag = 'input window, operand 9, single buffered']
    #allocation8 [shape = 'u8[45056]{0}', space=vmem, size = 0xb000, scoped, tag = 'input window, operand 10, single buffered']
    #allocation9 [shape = 's32[1]{0}', space=sflag, size = 0x4, scoped, tag = 'scoped memory for encoder_forward.1']
    #allocation10 [shape = 'u8[45056]{0}', space=vmem, size = 0xb000, scoped, tag = 'input window, operand 11, single buffered']
    #allocation11 [shape = 'u8[512]{0}', space=vmem, size = 0x400, scoped, tag = 'input window, operand 12, single buffered']
    #allocation12 [shape = 's32[1]{0}', space=sflag, size = 0x4, scoped, tag = 'scoped memory for encoder_forward.1']
    #allocation13 [shape = 'u8[512]{0}', space=vmem, size = 0x400, scoped, tag = 'input window, operand 13, single buffered']
    #allocation14 [shape = 'u8[512]{0}', space=vmem, size = 0x400, scoped, tag = 'input window, operand 14, single buffered']
    #allocation15 [shape = 's32[1]{0}', space=sflag, size = 0x4, scoped, tag = 'scoped memory for encoder_forward.1']
    #allocation16 [shape = 'u8[45056]{0}', space=vmem, size = 0xb000, scoped, tag = 'input window, operand 15, single buffered']
    #allocation17 [shape = 'u8[45056]{0}', space=vmem, size = 0xb000, scoped, tag = 'input window, operand 16, single buffered']
    #allocation18 [shape = 's32[1]{0}', space=sflag, size = 0x4, scoped, tag = 'scoped memory for encoder_forward.1']
    #allocation19 [shape = 'u8[512]{0}', space=vmem, size = 0x400, scoped, tag = 'input window, operand 17, single buffered']
    #allocation20 [shape = 'u8[512]{0}', space=vmem, size = 0x400, scoped, tag = 'input window, operand 18, single buffered']
    #allocation21 [shape = 's32[1]{0}', space=sflag, size = 0x4, scoped, tag = 'scoped memory for encoder_forward.1']
    #allocation22 [shape = 'u8[512]{0}', space=vmem, size = 0x400, scoped, tag = 'input window, operand 19, single buffered']
    #allocation23 [shape = 'u8[1024]{0}', space=vmem, size = 0x400, scoped, tag = 'output window, operand 0, single buffered']
    #allocation24 [shape = 'u8[512]{0}', space=vmem, size = 0x400, scoped, tag = 'output window, operand 1, single buffered']
    #allocation25 [shape = 's32[1]{0}', space=sflag, size = 0x4, scoped, tag = 'scoped memory for encoder_forward.1']
    %30 = vsyncpa [#allocation3], 0
    %31 = vsyncpa [#allocation6], 0
    %32 = vsyncpa [#allocation9], 0
    %33 = vsyncpa [#allocation12], 0
    %34 = vsyncpa [#allocation15], 0
    %35 = vsyncpa [#allocation18], 0
    %36 = vsyncpa [#allocation21], 0
    %37 = vsyncpa [#allocation4], 0
    %38 = vsyncpa [#allocation25], 0
    // Predicated region
    $region2: #{encoder_forward.1} parent=1 // pred_check
      _
    $region3: #{encoder_forward.1} parent=1 // pred_check_branch
      %40 = sbr.rel (0) target = $region5
    $region4: #{encoder_forward.1} parent=1 // pred_region
      _
    $region5: #{encoder_forward.1} parent=1 // pred_fallthru
      _
    // Predicated region
    $region6: #{encoder_forward.1} parent=1 // pred_check
      _
    $region7: #{encoder_forward.1} parent=1 // pred_check_branch
      %42 = sbr.rel (0) target = $region9
    $region8: #{encoder_forward.1} parent=1 // pred_region
      _
    $region9: #{encoder_forward.1} parent=1 // pred_fallthru
      _
    // Predicated region
    $region10: #{encoder_forward.1} parent=1 // pred_check
      _
    $region11: #{encoder_forward.1} parent=1 // pred_check_branch
      %44 = sbr.rel (0) target = $region13
    $region12: #{encoder_forward.1} parent=1 // pred_region
      _
    $region13: #{encoder_forward.1} parent=1 // pred_fallthru
      _
    // Predicated region
    $region14: #{encoder_forward.1} parent=1 // pred_check
      _
    $region15: #{encoder_forward.1} parent=1 // pred_check_branch
      %46 = sbr.rel (0) target = $region17
    $region16: #{encoder_forward.1} parent=1 // pred_region
      _
    $region17: #{encoder_forward.1} parent=1 // pred_fallthru
      _
    // Predicated region
    $region18: #{encoder_forward.1} parent=1 // pred_check
      _
    $region19: #{encoder_forward.1} parent=1 // pred_check_branch
      %48 = sbr.rel (0) target = $region21
    $region20: #{encoder_forward.1} parent=1 // pred_region
      _
    $region21: #{encoder_forward.1} parent=1 // pred_fallthru
      _
    // Predicated region
    $region22: #{encoder_forward.1} parent=1 // pred_check
      _
    $region23: #{encoder_forward.1} parent=1 // pred_check_branch
      %50 = sbr.rel (0) target = $region25
    $region24: #{encoder_forward.1} parent=1 // pred_region
      %s52 = ssub.s32 1408, 1408
      %53 = vsyncadd [#allocation3], %s52
      %s54 = sshll.u32 [#allocation2], 4
      %s55 = int_to_ptr.vmem [resolvable:$true] %s54
      %60 = dma.hbm_to_vmem [thread:$0]  %s5, 1408, %s55, [#allocation3], 128, 128, 8
    $region25: #{encoder_forward.1} parent=1 // pred_fallthru
      _
    // Predicated region
    $region26: #{encoder_forward.1} parent=1 // pred_check
      _
    $region27: #{encoder_forward.1} parent=1 // pred_check_branch
      %62 = sbr.rel (0) target = $region29
    $region28: #{encoder_forward.1} parent=1 // pred_region
      %s64 = ssub.s32 1408, 1408
      %65 = vsyncadd [#allocation6], %s64
      %s66 = sshll.u32 [#allocation5], 4
      %s67 = int_to_ptr.vmem [resolvable:$true] %s66
      %72 = dma.hbm_to_vmem [thread:$0]  %s6, 1408, %s67, [#allocation6], 128, 128, 8
    $region29: #{encoder_forward.1} parent=1 // pred_fallthru
      _
    // Predicated region
    $region30: #{encoder_forward.1} parent=1 // pred_check
      _
    $region31: #{encoder_forward.1} parent=1 // pred_check_branch
      %74 = sbr.rel (0) target = $region33
    $region32: #{encoder_forward.1} parent=1 // pred_region
      _
    $region33: #{encoder_forward.1} parent=1 // pred_fallthru
      _
    // Predicated region
    $region34: #{encoder_forward.1} parent=1 // pred_check
      _
    $region35: #{encoder_forward.1} parent=1 // pred_check_branch
      %76 = sbr.rel (0) target = $region37
    $region36: #{encoder_forward.1} parent=1 // pred_region
      _
    $region37: #{encoder_forward.1} parent=1 // pred_fallthru
      _
    // Predicated region
    $region38: #{encoder_forward.1} parent=1 // pred_check
      _
    $region39: #{encoder_forward.1} parent=1 // pred_check_branch
      %78 = sbr.rel (0) target = $region41
    $region40: #{encoder_forward.1} parent=1 // pred_region
      %s80 = ssub.s32 16, 16
      %81 = vsyncadd [#allocation6], %s80
      %s83 = sshll.u32 [#allocation7], 4
      %s84 = int_to_ptr.vmem [resolvable:$true] %s83
      %86 = dma.hbm_to_vmem [thread:$0]  %s9, 16, %s84, [#allocation6]
    $region41: #{encoder_forward.1} parent=1 // pred_fallthru
      _
    // Predicated region
    $region42: #{encoder_forward.1} parent=1 // pred_check
      _
    $region43: #{encoder_forward.1} parent=1 // pred_check_branch
      %88 = sbr.rel (0) target = $region45
    $region44: #{encoder_forward.1} parent=1 // pred_region
      %s90 = ssub.s32 1408, 1408
      %91 = vsyncadd [#allocation9], %s90
      %s92 = sshll.u32 [#allocation8], 4
      %s93 = int_to_ptr.vmem [resolvable:$true] %s92
      %98 = dma.hbm_to_vmem [thread:$0]  %s10, 1408, %s93, [#allocation9], 128, 128, 8
    $region45: #{encoder_forward.1} parent=1 // pred_fallthru
      _
    // Predicated region
    $region46: #{encoder_forward.1} parent=1 // pred_check
      _
    $region47: #{encoder_forward.1} parent=1 // pred_check_branch
      %100 = sbr.rel (0) target = $region49
    $region48: #{encoder_forward.1} parent=1 // pred_region
      %s102 = ssub.s32 1408, 1408
      %103 = vsyncadd [#allocation9], %s102
      %s104 = sshll.u32 [#allocation10], 4
      %s105 = int_to_ptr.vmem [resolvable:$true] %s104
      %110 = dma.hbm_to_vmem [thread:$0]  %s11, 1408, %s105, [#allocation9], 128, 128, 8
    $region49: #{encoder_forward.1} parent=1 // pred_fallthru
      _
    // Predicated region
    $region50: #{encoder_forward.1} parent=1 // pred_check
      _
    $region51: #{encoder_forward.1} parent=1 // pred_check_branch
      %112 = sbr.rel (0) target = $region53
    $region52: #{encoder_forward.1} parent=1 // pred_region
      %s114 = ssub.s32 16, 16
      %115 = vsyncadd [#allocation12], %s114
      %s117 = sshll.u32 [#allocation11], 4
      %s118 = int_to_ptr.vmem [resolvable:$true] %s117
      %120 = dma.hbm_to_vmem [thread:$0]  %s12, 16, %s118, [#allocation12]
    $region53: #{encoder_forward.1} parent=1 // pred_fallthru
      _
    // Predicated region
    $region54: #{encoder_forward.1} parent=1 // pred_check
      _
    $region55: #{encoder_forward.1} parent=1 // pred_check_branch
      %122 = sbr.rel (0) target = $region57
    $region56: #{encoder_forward.1} parent=1 // pred_region
      %s124 = ssub.s32 16, 16
      %125 = vsyncadd [#allocation12], %s124
      %s127 = sshll.u32 [#allocation13], 4
      %s128 = int_to_ptr.vmem [resolvable:$true] %s127
      %130 = dma.hbm_to_vmem [thread:$0]  %s13, 16, %s128, [#allocation12]
    $region57: #{encoder_forward.1} parent=1 // pred_fallthru
      _
    // Predicated region
    $region58: #{encoder_forward.1} parent=1 // pred_check
      _
    $region59: #{encoder_forward.1} parent=1 // pred_check_branch
      %132 = sbr.rel (0) target = $region61
    $region60: #{encoder_forward.1} parent=1 // pred_region
      %s134 = ssub.s32 16, 16
      %135 = vsyncadd [#allocation15], %s134
      %s137 = sshll.u32 [#allocation14], 4
      %s138 = int_to_ptr.vmem [resolvable:$true] %s137
      %140 = dma.hbm_to_vmem [thread:$0]  %s14, 16, %s138, [#allocation15]
    $region61: #{encoder_forward.1} parent=1 // pred_fallthru
      _
    // Predicated region
    $region62: #{encoder_forward.1} parent=1 // pred_check
      _
    $region63: #{encoder_forward.1} parent=1 // pred_check_branch
      %142 = sbr.rel (0) target = $region65
    $region64: #{encoder_forward.1} parent=1 // pred_region
      %s144 = ssub.s32 1408, 1408
      %145 = vsyncadd [#allocation15], %s144
      %s146 = sshll.u32 [#allocation16], 4
      %s147 = int_to_ptr.vmem [resolvable:$true] %s146
      %152 = dma.hbm_to_vmem [thread:$0]  %s15, 1408, %s147, [#allocation15], 128, 128, 8
    $region65: #{encoder_forward.1} parent=1 // pred_fallthru
      _
    // Predicated region
    $region66: #{encoder_forward.1} parent=1 // pred_check
      _
    $region67: #{encoder_forward.1} parent=1 // pred_check_branch
      %154 = sbr.rel (0) target = $region69
    $region68: #{encoder_forward.1} parent=1 // pred_region
      %s156 = ssub.s32 1408, 1408
      %157 = vsyncadd [#allocation18], %s156
      %s158 = sshll.u32 [#allocation17], 4
      %s159 = int_to_ptr.vmem [resolvable:$true] %s158
      %164 = dma.hbm_to_vmem [thread:$0]  %s16, 1408, %s159, [#allocation18], 128, 128, 8
    $region69: #{encoder_forward.1} parent=1 // pred_fallthru
      _
    // Predicated region
    $region70: #{encoder_forward.1} parent=1 // pred_check
      _
    $region71: #{encoder_forward.1} parent=1 // pred_check_branch
      %166 = sbr.rel (0) target = $region73
    $region72: #{encoder_forward.1} parent=1 // pred_region
      %s168 = ssub.s32 16, 16
      %169 = vsyncadd [#allocation18], %s168
      %s171 = sshll.u32 [#allocation19], 4
      %s172 = int_to_ptr.vmem [resolvable:$true] %s171
      %174 = dma.hbm_to_vmem [thread:$0]  %s17, 16, %s172, [#allocation18]
    $region73: #{encoder_forward.1} parent=1 // pred_fallthru
      _
    // Predicated region
    $region74: #{encoder_forward.1} parent=1 // pred_check
      _
    $region75: #{encoder_forward.1} parent=1 // pred_check_branch
      %176 = sbr.rel (0) target = $region77
    $region76: #{encoder_forward.1} parent=1 // pred_region
      %s178 = ssub.s32 16, 16
      %179 = vsyncadd [#allocation21], %s178
      %s181 = sshll.u32 [#allocation20], 4
      %s182 = int_to_ptr.vmem [resolvable:$true] %s181
      %184 = dma.hbm_to_vmem [thread:$0]  %s18, 16, %s182, [#allocation21]
    $region77: #{encoder_forward.1} parent=1 // pred_fallthru
      _
    // Predicated region
    $region78: #{encoder_forward.1} parent=1 // pred_check
      _
    $region79: #{encoder_forward.1} parent=1 // pred_check_branch
      %186 = sbr.rel (0) target = $region81
    $region80: #{encoder_forward.1} parent=1 // pred_region
      %s188 = ssub.s32 16, 16
      %189 = vsyncadd [#allocation21], %s188
      %s191 = sshll.u32 [#allocation22], 4
      %s192 = int_to_ptr.vmem [resolvable:$true] %s191
      %194 = dma.hbm_to_vmem [thread:$0]  %s19, 16, %s192, [#allocation21]
    $region81: #{encoder_forward.1} parent=1 // pred_fallthru
      _
    // Predicated region
    $region82: #{encoder_forward.1} parent=1 // pred_check
      _
    $region83: #{encoder_forward.1} parent=1 // pred_check_branch
      %196 = sbr.rel (0) target = $region85
    $region84: #{encoder_forward.1} parent=1 // pred_region
      _
    $region85: #{encoder_forward.1} parent=1 // pred_fallthru
      _
    // Predicated region
    $region86: #{encoder_forward.1} parent=1 // pred_check
      _
    $region87: #{encoder_forward.1} parent=1 // pred_check_branch
      %198 = sbr.rel (0) target = $region89
    $region88: #{encoder_forward.1} parent=1 // pred_region
      _
    $region89: #{encoder_forward.1} parent=1 // pred_fallthru
      _
    // Predicated region
    $region90: #{encoder_forward.1} parent=1 // pred_check
      _
    $region91: #{encoder_forward.1} parent=1 // pred_check_branch
      %200 = sbr.rel (0) target = $region93
    $region92: #{encoder_forward.1} parent=1 // pred_region
      _
    $region93: #{encoder_forward.1} parent=1 // pred_fallthru
      _
    // Predicated region
    $region94: #{encoder_forward.1} parent=1 // pred_check
      _
    $region95: #{encoder_forward.1} parent=1 // pred_check_branch
      %202 = sbr.rel (0) target = $region97
    $region96: #{encoder_forward.1} parent=1 // pred_region
      %203 = dma.done [#allocation3], 1408
    $region97: #{encoder_forward.1} parent=1 // pred_fallthru
      _
    // Predicated region
    $region98: #{encoder_forward.1} parent=1 // pred_check
      _
    $region99: #{encoder_forward.1} parent=1 // pred_check_branch
      %205 = sbr.rel (0) target = $region101
    $region100: #{encoder_forward.1} parent=1 // pred_region
      %206 = dma.done [#allocation6], 1408
    $region101: #{encoder_forward.1} parent=1 // pred_fallthru
      _
    // Predicated region
    $region102: #{encoder_forward.1} parent=1 // pred_check
      _
    $region103: #{encoder_forward.1} parent=1 // pred_check_branch
      %208 = sbr.rel (0) target = $region105
    $region104: #{encoder_forward.1} parent=1 // pred_region
      %209 = dma.done [#allocation6], 16
    $region105: #{encoder_forward.1} parent=1 // pred_fallthru
      _
    // Predicated region
    $region106: #{encoder_forward.1} parent=1 // pred_check
      _
    $region107: #{encoder_forward.1} parent=1 // pred_check_branch
      %211 = sbr.rel (0) target = $region109
    $region108: #{encoder_forward.1} parent=1 // pred_region
      %212 = dma.done [#allocation9], 1408
    $region109: #{encoder_forward.1} parent=1 // pred_fallthru
      _
    // Predicated region
    $region110: #{encoder_forward.1} parent=1 // pred_check
      _
    $region111: #{encoder_forward.1} parent=1 // pred_check_branch
      %214 = sbr.rel (0) target = $region113
    $region112: #{encoder_forward.1} parent=1 // pred_region
      %215 = dma.done [#allocation9], 1408
    $region113: #{encoder_forward.1} parent=1 // pred_fallthru
      _
    // Predicated region
    $region114: #{encoder_forward.1} parent=1 // pred_check
      _
    $region115: #{encoder_forward.1} parent=1 // pred_check_branch
      %217 = sbr.rel (0) target = $region117
    $region116: #{encoder_forward.1} parent=1 // pred_region
      %218 = dma.done [#allocation12], 16
    $region117: #{encoder_forward.1} parent=1 // pred_fallthru
      _
    // Predicated region
    $region118: #{encoder_forward.1} parent=1 // pred_check
      _
    $region119: #{encoder_forward.1} parent=1 // pred_check_branch
      %220 = sbr.rel (0) target = $region121
    $region120: #{encoder_forward.1} parent=1 // pred_region
      %221 = dma.done [#allocation12], 16
    $region121: #{encoder_forward.1} parent=1 // pred_fallthru
      _
    // Predicated region
    $region122: #{encoder_forward.1} parent=1 // pred_check
      _
    $region123: #{encoder_forward.1} parent=1 // pred_check_branch
      %223 = sbr.rel (0) target = $region125
    $region124: #{encoder_forward.1} parent=1 // pred_region
      %224 = dma.done [#allocation15], 16
    $region125: #{encoder_forward.1} parent=1 // pred_fallthru
      _
    // Predicated region
    $region126: #{encoder_forward.1} parent=1 // pred_check
      _
    $region127: #{encoder_forward.1} parent=1 // pred_check_branch
      %226 = sbr.rel (0) target = $region129
    $region128: #{encoder_forward.1} parent=1 // pred_region
      %227 = dma.done [#allocation15], 1408
    $region129: #{encoder_forward.1} parent=1 // pred_fallthru
      _
    // Predicated region
    $region130: #{encoder_forward.1} parent=1 // pred_check
      _
    $region131: #{encoder_forward.1} parent=1 // pred_check_branch
      %229 = sbr.rel (0) target = $region133
    $region132: #{encoder_forward.1} parent=1 // pred_region
      %230 = dma.done [#allocation18], 1408
    $region133: #{encoder_forward.1} parent=1 // pred_fallthru
      _
    // Predicated region
    $region134: #{encoder_forward.1} parent=1 // pred_check
      _
    $region135: #{encoder_forward.1} parent=1 // pred_check_branch
      %232 = sbr.rel (0) target = $region137
    $region136: #{encoder_forward.1} parent=1 // pred_region
      %233 = dma.done [#allocation18], 16
    $region137: #{encoder_forward.1} parent=1 // pred_fallthru
      _
    // Predicated region
    $region138: #{encoder_forward.1} parent=1 // pred_check
      _
    $region139: #{encoder_forward.1} parent=1 // pred_check_branch
      %235 = sbr.rel (0) target = $region141
    $region140: #{encoder_forward.1} parent=1 // pred_region
      %236 = dma.done [#allocation21], 16
    $region141: #{encoder_forward.1} parent=1 // pred_fallthru
      _
    // Predicated region
    $region142: #{encoder_forward.1} parent=1 // pred_check
      _
    $region143: #{encoder_forward.1} parent=1 // pred_check_branch
      %238 = sbr.rel (0) target = $region145
    $region144: #{encoder_forward.1} parent=1 // pred_region
      %239 = dma.done [#allocation21], 16
    $region145: #{encoder_forward.1} parent=1 // pred_fallthru
      _
    %v240 = vld [vmem:[%s0] sm:$0x3]
    %v241 = vld [vmem:[%s1] sm:$0xff]
    %v242 = vld [vmem:[%s1 + $0x8] sm:$0xff]
    %v243 = vld [vmem:[%s1 + $0x10] sm:$0xff]
    %v244 = vld [vmem:[%s1 + $0x18] sm:$0xff]
    %v245 = vld [vmem:[%s1 + $0x20] sm:$0xff]
    %v246 = vld [vmem:[%s1 + $0x28] sm:$0xff]
    %v247 = vld [vmem:[%s1 + $0x30] sm:$0xff]
    %v248 = vld [vmem:[%s1 + $0x38] sm:$0xff]
    %v249 = vld [vmem:[%s1 + $0x40] sm:$0xff]
    %v250 = vld [vmem:[%s1 + $0x48] sm:$0xff]
    %v251 = vld [vmem:[%s1 + $0x50] sm:$0xff]
    %v252 = vld [vmem:[%s2] sm:$0x1]
    %v254 = vlaneseq
    %v255 = vshrl.u32 %v254, 7
    %v256 = vsub.s32 0, %v255
    %v257 = vrot.slane %v252, %v256
    %vm259 = vcmask 719872
    %v261 = vsel %vm259, %v240, 0
    %263 = vmatprep.subr.mxu0 0.0
    %264 = vmatpush1.msra.mxu0 %v241
    %265 = vmatprep.subr.mxu0 0.0
    %266 = vmatpush1.msra.mxu0 %v242
    %267 = vmatprep.subr.mxu0 0.0
    %268 = vmatpush1.msra.mxu0 %v243
    %269 = vmatprep.subr.mxu0 0.0
    %270 = vmatpush1.msra.mxu0 %v244
    %271 = vmatprep.subr.mxu0 0.0
    %272 = vmatpush1.msra.mxu0 %v245
    %273 = vmatprep.subr.mxu0 0.0
    %274 = vmatpush1.msra.mxu0 %v246
    %275 = vmatprep.subr.mxu0 0.0
    %276 = vmatpush1.msra.mxu0 %v247
    %277 = vmatprep.subr.mxu0 0.0
    %278 = vmatpush1.msra.mxu0 %v248
    %279 = vmatprep.subr.mxu0 0.0
    %280 = vmatpush1.msra.mxu0 %v249
    %281 = vmatprep.subr.mxu0 0.0
    %282 = vmatpush1.msra.mxu0 %v250
    %283 = vmatprep.subr.mxu0 0.0
    %284 = vmatpush1.msra.mxu0 %v251
    %285 = vmatprep.subr.mxu0 0.0
    %286 = vmatpush1.msra.mxu0 0.0
    %287 = vmatprep.subr.mxu0 0.0
    %288 = vmatpush1.msra.mxu0 0.0
    %289 = vmatprep.subr.mxu0 0.0
    %290 = vmatpush1.msra.mxu0 0.0
    %291 = vmatprep.subr.mxu0 0.0
    %292 = vmatpush1.msra.mxu0 0.0
    %293 = vmatprep.subr.mxu0 0.0
    %294 = vmatpush1.msra.mxu0 0.0
    %295 = vmatprep.subr.mxu0 0.0
    %296 = vmatpush1.msra.mxu0 0.0
    %297 = vmatprep.subr.mxu0 0.0
    %298 = vmatpush1.msra.mxu0 0.0
    %299 = vmatprep.subr.mxu0 0.0
    %300 = vmatpush1.msra.mxu0 0.0
    %301 = vmatprep.subr.mxu0 0.0
    %302 = vmatpush1.msra.mxu0 0.0
    %303 = vmatprep.subr.mxu0 0.0
    %304 = vmatpush1.msra.mxu0 0.0
    %305 = vmatprep.subr.mxu0 0.0
    %306 = vmatpush1.msra.mxu0 0.0
    %307 = vmatprep.subr.mxu0 0.0
    %308 = vmatpush1.msra.mxu0 0.0
    %309 = vmatprep.subr.mxu0 0.0
    %310 = vmatpush1.msra.mxu0 0.0
    %311 = vmatprep.subr.mxu0 0.0
    %312 = vmatpush1.msra.mxu0 0.0
    %313 = vmatprep.subr.mxu0 0.0
    %314 = vmatpush1.msra.mxu0 0.0
    %315 = vmatprep.subr.mxu0 0.0
    %316 = vmatpush1.msra.mxu0 0.0
    %317 = vmatprep.subr.mxu0 0.0
    %318 = vmatpush1.msra.mxu0 0.0
    %319 = vmatprep.subr.mxu0 0.0
    %320 = vmatpush1.msra.mxu0 0.0
    %321 = vmatprep.subr.mxu0 0.0
    %322 = vmatpush1.msra.mxu0 0.0
    %323 = vmatprep.subr.mxu0 0.0
    %324 = vmatpush1.msra.mxu0 0.0
    %325 = vmatprep.subr.mxu0 0.0
    %326 = vmatpush1.msra.mxu0 0.0
    %327 = vmatprep.mubr.f32.mxu0 0.0
    %328 = vmatmul.mubr.f32.gmra.mrb[0].mxu0 %v261
    %v329 = vpop.f32.mrb[0].mxu0
    %v330 = vadd.f32 %v257, %v329
    %v331 = vpop.f32.mrb[0].mxu0
    %332 = vdwg.mxu0
    %vm333 = vcmask 713728
    %v334 = vsel %vm333, %v330, 0.0
    %v335 = vrot.slane %v334, 4
    %v336 = vadd.f32 %v334, %v335
    %v337 = vrot.slane %v336, 2
    %v338 = vadd.f32 %v336, %v337
    %v339 = vrot.slane %v338, 1
    %v340 = vadd.f32 %v338, %v339
    %v341 = vmul.f32 %v330, %v330
    %v342 = vsel %vm333, %v341, 0.0
    %v343 = vrot.slane %v342, 4
    %v344 = vadd.f32 %v342, %v343
    %v345 = vrot.slane %v344, 2
    %v346 = vadd.f32 %v344, %v345
    %v347 = vrot.slane %v346, 1
    %v348 = vadd.f32 %v346, %v347
    %v349 = vld [vmem:[#allocation2] sm:$0xff]
    %v350 = vld [vmem:[#allocation2 + $0x8] sm:$0xff]
    %v351 = vld [vmem:[#allocation2 + $0x10] sm:$0xff]
    %v352 = vld [vmem:[#allocation2 + $0x18] sm:$0xff]
    %v353 = vld [vmem:[#allocation2 + $0x20] sm:$0xff]
    %v354 = vld [vmem:[#allocation2 + $0x28] sm:$0xff]
    %v355 = vld [vmem:[#allocation2 + $0x30] sm:$0xff]
    %v356 = vld [vmem:[#allocation2 + $0x38] sm:$0xff]
    %v357 = vld [vmem:[#allocation2 + $0x40] sm:$0xff]
    %v358 = vld [vmem:[#allocation2 + $0x48] sm:$0xff]
    %v359 = vld [vmem:[#allocation2 + $0x50] sm:$0xff]
    %v361 = vsel %vm259, %v340, 0
    %363 = vmatprep.subr.mxu0 0.0
    %364 = vmatpush1.msra.mxu0 %v349
    %365 = vmatprep.subr.mxu0 0.0
    %366 = vmatpush1.msra.mxu0 %v350
    %367 = vmatprep.subr.mxu0 0.0
    %368 = vmatpush1.msra.mxu0 %v351
    %369 = vmatprep.subr.mxu0 0.0
    %370 = vmatpush1.msra.mxu0 %v352
    %371 = vmatprep.subr.mxu0 0.0
    %372 = vmatpush1.msra.mxu0 %v353
    %373 = vmatprep.subr.mxu0 0.0
    %374 = vmatpush1.msra.mxu0 %v354
    %375 = vmatprep.subr.mxu0 0.0
    %376 = vmatpush1.msra.mxu0 %v355
    %377 = vmatprep.subr.mxu0 0.0
    %378 = vmatpush1.msra.mxu0 %v356
    %379 = vmatprep.subr.mxu0 0.0
    %380 = vmatpush1.msra.mxu0 %v357
    %381 = vmatprep.subr.mxu0 0.0
    %382 = vmatpush1.msra.mxu0 %v358
    %383 = vmatprep.subr.mxu0 0.0
    %384 = vmatpush1.msra.mxu0 %v359
    %385 = vmatprep.subr.mxu0 0.0
    %386 = vmatpush1.msra.mxu0 0.0
    %387 = vmatprep.subr.mxu0 0.0
    %388 = vmatpush1.msra.mxu0 0.0
    %389 = vmatprep.subr.mxu0 0.0
    %390 = vmatpush1.msra.mxu0 0.0
    %391 = vmatprep.subr.mxu0 0.0
    %392 = vmatpush1.msra.mxu0 0.0
    %393 = vmatprep.subr.mxu0 0.0
    %394 = vmatpush1.msra.mxu0 0.0
    %395 = vmatprep.subr.mxu0 0.0
    %396 = vmatpush1.msra.mxu0 0.0
    %397 = vmatprep.subr.mxu0 0.0
    %398 = vmatpush1.msra.mxu0 0.0
    %399 = vmatprep.subr.mxu0 0.0
    %400 = vmatpush1.msra.mxu0 0.0
    %401 = vmatprep.subr.mxu0 0.0
    %402 = vmatpush1.msra.mxu0 0.0
    %403 = vmatprep.subr.mxu0 0.0
    %404 = vmatpush1.msra.mxu0 0.0
    %405 = vmatprep.subr.mxu0 0.0
    %406 = vmatpush1.msra.mxu0 0.0
    %407 = vmatprep.subr.mxu0 0.0
    %408 = vmatpush1.msra.mxu0 0.0
    %409 = vmatprep.subr.mxu0 0.0
    %410 = vmatpush1.msra.mxu0 0.0
    %411 = vmatprep.subr.mxu0 0.0
    %412 = vmatpush1.msra.mxu0 0.0
    %413 = vmatprep.subr.mxu0 0.0
    %414 = vmatpush1.msra.mxu0 0.0
    %415 = vmatprep.subr.mxu0 0.0
    %416 = vmatpush1.msra.mxu0 0.0
    %417 = vmatprep.subr.mxu0 0.0
    %418 = vmatpush1.msra.mxu0 0.0
    %419 = vmatprep.subr.mxu0 0.0
    %420 = vmatpush1.msra.mxu0 0.0
    %421 = vmatprep.subr.mxu0 0.0
    %422 = vmatpush1.msra.mxu0 0.0
    %423 = vmatprep.subr.mxu0 0.0
    %424 = vmatpush1.msra.mxu0 0.0
    %425 = vmatprep.subr.mxu0 0.0
    %426 = vmatpush1.msra.mxu0 0.0
    %427 = vmatprep.mubr.f32.mxu0 0.0
    %428 = vmatmul.mubr.f32.gmra.mrb[0].mxu0 %v361
    %v429 = vpop.f32.mrb[0].mxu0
    %v430 = vadd.f32 0.0, %v429
    %v431 = vpop.f32.mrb[0].mxu0
    %432 = vdwg.mxu0
    %v433 = vmul.f32 %v430, 0.011363637
    %v435 = vsel %vm259, %v348, 0
    %437 = vmatprep.subr.mxu0 0.0
    %438 = vmatpush1.msra.mxu0 %v349
    %439 = vmatprep.subr.mxu0 0.0
    %440 = vmatpush1.msra.mxu0 %v350
    %441 = vmatprep.subr.mxu0 0.0
    %442 = vmatpush1.msra.mxu0 %v351
    %443 = vmatprep.subr.mxu0 0.0
    %444 = vmatpush1.msra.mxu0 %v352
    %445 = vmatprep.subr.mxu0 0.0
    %446 = vmatpush1.msra.mxu0 %v353
    %447 = vmatprep.subr.mxu0 0.0
    %448 = vmatpush1.msra.mxu0 %v354
    %449 = vmatprep.subr.mxu0 0.0
    %450 = vmatpush1.msra.mxu0 %v355
    %451 = vmatprep.subr.mxu0 0.0
    %452 = vmatpush1.msra.mxu0 %v356
    %453 = vmatprep.subr.mxu0 0.0
    %454 = vmatpush1.msra.mxu0 %v357
    %455 = vmatprep.subr.mxu0 0.0
    %456 = vmatpush1.msra.mxu0 %v358
    %457 = vmatprep.subr.mxu0 0.0
    %458 = vmatpush1.msra.mxu0 %v359
    %459 = vmatprep.subr.mxu0 0.0
    %460 = vmatpush1.msra.mxu0 0.0
    %461 = vmatprep.subr.mxu0 0.0
    %462 = vmatpush1.msra.mxu0 0.0
    %463 = vmatprep.subr.mxu0 0.0
    %464 = vmatpush1.msra.mxu0 0.0
    %465 = vmatprep.subr.mxu0 0.0
    %466 = vmatpush1.msra.mxu0 0.0
    %467 = vmatprep.subr.mxu0 0.0
    %468 = vmatpush1.msra.mxu0 0.0
    %469 = vmatprep.subr.mxu0 0.0
    %470 = vmatpush1.msra.mxu0 0.0
    %471 = vmatprep.subr.mxu0 0.0
    %472 = vmatpush1.msra.mxu0 0.0
    %473 = vmatprep.subr.mxu0 0.0
    %474 = vmatpush1.msra.mxu0 0.0
    %475 = vmatprep.subr.mxu0 0.0
    %476 = vmatpush1.msra.mxu0 0.0
    %477 = vmatprep.subr.mxu0 0.0
    %478 = vmatpush1.msra.mxu0 0.0
    %479 = vmatprep.subr.mxu0 0.0
    %480 = vmatpush1.msra.mxu0 0.0
    %481 = vmatprep.subr.mxu0 0.0
    %482 = vmatpush1.msra.mxu0 0.0
    %483 = vmatprep.subr.mxu0 0.0
    %484 = vmatpush1.msra.mxu0 0.0
    %485 = vmatprep.subr.mxu0 0.0
    %486 = vmatpush1.msra.mxu0 0.0
    %487 = vmatprep.subr.mxu0 0.0
    %488 = vmatpush1.msra.mxu0 0.0
    %489 = vmatprep.subr.mxu0 0.0
    %490 = vmatpush1.msra.mxu0 0.0
    %491 = vmatprep.subr.mxu0 0.0
    %492 = vmatpush1.msra.mxu0 0.0
    %493 = vmatprep.subr.mxu0 0.0
    %494 = vmatpush1.msra.mxu0 0.0
    %495 = vmatprep.subr.mxu0 0.0
    %496 = vmatpush1.msra.mxu0 0.0
    %497 = vmatprep.subr.mxu0 0.0
    %498 = vmatpush1.msra.mxu0 0.0
    %499 = vmatprep.subr.mxu0 0.0
    %500 = vmatpush1.msra.mxu0 0.0
    %501 = vmatprep.mubr.f32.mxu0 0.0
    %502 = vmatmul.mubr.f32.gmra.mrb[0].mxu0 %v435
    %v503 = vpop.f32.mrb[0].mxu0
    %v504 = vadd.f32 0.0, %v503
    %v505 = vpop.f32.mrb[0].mxu0
    %506 = vdwg.mxu0
    %v507 = vmul.f32 %v504, 0.011363637
    %v508 = vmul.f32 %v433, %v433
    %v509 = vsub.f32 %v507, %v508
    %v510 = vld [vmem:[%s3] sm:$0x1]
    %v511 = vadd.f32 %v509, 1e-05
    %v512 = vrsqrt.pop %v511
    %v513 = vmul.f32 %v510, %v512
    %v514 = vld [vmem:[%s4] sm:$0x1]
    %v515 = vmul.f32 %v433, %v513
    %v516 = vsub.f32 %v514, %v515
    %v518 = vlaneseq
    %v519 = vshrl.u32 %v518, 7
    %v520 = vsub.s32 0, %v519
    %v521 = vrot.slane %v513, %v520
    %v523 = vmul.f32 %v330, %v521
    %v525 = vlaneseq
    %v526 = vshrl.u32 %v525, 7
    %v527 = vsub.s32 0, %v526
    %v528 = vrot.slane %v516, %v527
    %v530 = vadd.f32 %v523, %v528
    %v531 = vmax.f32 %v530, 0.0
    %v532 = vand.u32 2147483647, %v530
    %v533 = vsub.f32 0.0, %v532
    %v534 = vmul.f32 %v533, 1.442695
    %v535 = vpow.pop %v534
    %v536 = vadd.f32 %v535, 1.0
    %v537 = vlog2.pop %v536
    %v538 = vmul.f32 %v537, 0.6931472
    %v539 = vadd.f32 %v531, %v538
    %v540 = vtanh.pop %v539
    %v541 = vmul.f32 %v530, %v540
    %v542 = vld [vmem:[#allocation5] sm:$0xff]
    %v543 = vld [vmem:[#allocation5 + $0x8] sm:$0xff]
    %v544 = vld [vmem:[#allocation5 + $0x10] sm:$0xff]
    %v545 = vld [vmem:[#allocation5 + $0x18] sm:$0xff]
    %v546 = vld [vmem:[#allocation5 + $0x20] sm:$0xff]
    %v547 = vld [vmem:[#allocation5 + $0x28] sm:$0xff]
    %v548 = vld [vmem:[#allocation5 + $0x30] sm:$0xff]
    %v549 = vld [vmem:[#allocation5 + $0x38] sm:$0xff]
    %v550 = vld [vmem:[#allocation5 + $0x40] sm:$0xff]
    %v551 = vld [vmem:[#allocation5 + $0x48] sm:$0xff]
    %v552 = vld [vmem:[#allocation5 + $0x50] sm:$0xff]
    %v553 = vld [vmem:[%s7] sm:$0x1]
    %v555 = vlaneseq
    %v556 = vshrl.u32 %v555, 7
    %v557 = vsub.s32 0, %v556
    %v558 = vrot.slane %v553, %v557
    %v561 = vsel %vm259, %v541, 0
    %563 = vmatprep.subr.mxu0 0.0
    %564 = vmatpush1.msra.mxu0 %v542
    %565 = vmatprep.subr.mxu0 0.0
    %566 = vmatpush1.msra.mxu0 %v543
    %567 = vmatprep.subr.mxu0 0.0
    %568 = vmatpush1.msra.mxu0 %v544
    %569 = vmatprep.subr.mxu0 0.0
    %570 = vmatpush1.msra.mxu0 %v545
    %571 = vmatprep.subr.mxu0 0.0
    %572 = vmatpush1.msra.mxu0 %v546
    %573 = vmatprep.subr.mxu0 0.0
    %574 = vmatpush1.msra.mxu0 %v547
    %575 = vmatprep.subr.mxu0 0.0
    %576 = vmatpush1.msra.mxu0 %v548
    %577 = vmatprep.subr.mxu0 0.0
    %578 = vmatpush1.msra.mxu0 %v549
    %579 = vmatprep.subr.mxu0 0.0
    %580 = vmatpush1.msra.mxu0 %v550
    %581 = vmatprep.subr.mxu0 0.0
    %582 = vmatpush1.msra.mxu0 %v551
    %583 = vmatprep.subr.mxu0 0.0
    %584 = vmatpush1.msra.mxu0 %v552
    %585 = vmatprep.subr.mxu0 0.0
    %586 = vmatpush1.msra.mxu0 0.0
    %587 = vmatprep.subr.mxu0 0.0
    %588 = vmatpush1.msra.mxu0 0.0
    %589 = vmatprep.subr.mxu0 0.0
    %590 = vmatpush1.msra.mxu0 0.0
    %591 = vmatprep.subr.mxu0 0.0
    %592 = vmatpush1.msra.mxu0 0.0
    %593 = vmatprep.subr.mxu0 0.0
    %594 = vmatpush1.msra.mxu0 0.0
    %595 = vmatprep.subr.mxu0 0.0
    %596 = vmatpush1.msra.mxu0 0.0
    %597 = vmatprep.subr.mxu0 0.0
    %598 = vmatpush1.msra.mxu0 0.0
    %599 = vmatprep.subr.mxu0 0.0
    %600 = vmatpush1.msra.mxu0 0.0
    %601 = vmatprep.subr.mxu0 0.0
    %602 = vmatpush1.msra.mxu0 0.0
    %603 = vmatprep.subr.mxu0 0.0
    %604 = vmatpush1.msra.mxu0 0.0
    %605 = vmatprep.subr.mxu0 0.0
    %606 = vmatpush1.msra.mxu0 0.0
    %607 = vmatprep.subr.mxu0 0.0
    %608 = vmatpush1.msra.mxu0 0.0
    %609 = vmatprep.subr.mxu0 0.0
    %610 = vmatpush1.msra.mxu0 0.0
    %611 = vmatprep.subr.mxu0 0.0
    %612 = vmatpush1.msra.mxu0 0.0
    %613 = vmatprep.subr.mxu0 0.0
    %614 = vmatpush1.msra.mxu0 0.0
    %615 = vmatprep.subr.mxu0 0.0
    %616 = vmatpush1.msra.mxu0 0.0
    %617 = vmatprep.subr.mxu0 0.0
    %618 = vmatpush1.msra.mxu0 0.0
    %619 = vmatprep.subr.mxu0 0.0
    %620 = vmatpush1.msra.mxu0 0.0
    %621 = vmatprep.subr.mxu0 0.0
    %622 = vmatpush1.msra.mxu0 0.0
    %623 = vmatprep.subr.mxu0 0.0
    %624 = vmatpush1.msra.mxu0 0.0
    %625 = vmatprep.subr.mxu0 0.0
    %626 = vmatpush1.msra.mxu0 0.0
    %627 = vmatprep.mubr.f32.mxu0 0.0
    %628 = vmatmul.mubr.f32.gmra.mrb[0].mxu0 %v561
    %v629 = vpop.f32.mrb[0].mxu0
    %v630 = vadd.f32 %v558, %v629
    %v631 = vpop.f32.mrb[0].mxu0
    %632 = vdwg.mxu0
    %v633 = vsel %vm333, %v630, 0.0
    %v634 = vrot.slane %v633, 4
    %v635 = vadd.f32 %v633, %v634
    %v636 = vrot.slane %v635, 2
    %v637 = vadd.f32 %v635, %v636
    %v638 = vrot.slane %v637, 1
    %v639 = vadd.f32 %v637, %v638
    %v640 = vmul.f32 %v630, %v630
    %v641 = vsel %vm333, %v640, 0.0
    %v642 = vrot.slane %v641, 4
    %v643 = vadd.f32 %v641, %v642
    %v644 = vrot.slane %v643, 2
    %v645 = vadd.f32 %v643, %v644
    %v646 = vrot.slane %v645, 1
    %v647 = vadd.f32 %v645, %v646
    %v648 = vld [vmem:[#allocation8] sm:$0xff]
    %v649 = vld [vmem:[#allocation8 + $0x8] sm:$0xff]
    %v650 = vld [vmem:[#allocation8 + $0x10] sm:$0xff]
    %v651 = vld [vmem:[#allocation8 + $0x18] sm:$0xff]
    %v652 = vld [vmem:[#allocation8 + $0x20] sm:$0xff]
    %v653 = vld [vmem:[#allocation8 + $0x28] sm:$0xff]
    %v654 = vld [vmem:[#allocation8 + $0x30] sm:$0xff]
    %v655 = vld [vmem:[#allocation8 + $0x38] sm:$0xff]
    %v656 = vld [vmem:[#allocation8 + $0x40] sm:$0xff]
    %v657 = vld [vmem:[#allocation8 + $0x48] sm:$0xff]
    %v658 = vld [vmem:[#allocation8 + $0x50] sm:$0xff]
    %v660 = vsel %vm259, %v639, 0
    %662 = vmatprep.subr.mxu0 0.0
    %663 = vmatpush1.msra.mxu0 %v648
    %664 = vmatprep.subr.mxu0 0.0
    %665 = vmatpush1.msra.mxu0 %v649
    %666 = vmatprep.subr.mxu0 0.0
    %667 = vmatpush1.msra.mxu0 %v650
    %668 = vmatprep.subr.mxu0 0.0
    %669 = vmatpush1.msra.mxu0 %v651
    %670 = vmatprep.subr.mxu0 0.0
    %671 = vmatpush1.msra.mxu0 %v652
    %672 = vmatprep.subr.mxu0 0.0
    %673 = vmatpush1.msra.mxu0 %v653
    %674 = vmatprep.subr.mxu0 0.0
    %675 = vmatpush1.msra.mxu0 %v654
    %676 = vmatprep.subr.mxu0 0.0
    %677 = vmatpush1.msra.mxu0 %v655
    %678 = vmatprep.subr.mxu0 0.0
    %679 = vmatpush1.msra.mxu0 %v656
    %680 = vmatprep.subr.mxu0 0.0
    %681 = vmatpush1.msra.mxu0 %v657
    %682 = vmatprep.subr.mxu0 0.0
    %683 = vmatpush1.msra.mxu0 %v658
    %684 = vmatprep.subr.mxu0 0.0
    %685 = vmatpush1.msra.mxu0 0.0
    %686 = vmatprep.subr.mxu0 0.0
    %687 = vmatpush1.msra.mxu0 0.0
    %688 = vmatprep.subr.mxu0 0.0
    %689 = vmatpush1.msra.mxu0 0.0
    %690 = vmatprep.subr.mxu0 0.0
    %691 = vmatpush1.msra.mxu0 0.0
    %692 = vmatprep.subr.mxu0 0.0
    %693 = vmatpush1.msra.mxu0 0.0
    %694 = vmatprep.subr.mxu0 0.0
    %695 = vmatpush1.msra.mxu0 0.0
    %696 = vmatprep.subr.mxu0 0.0
    %697 = vmatpush1.msra.mxu0 0.0
    %698 = vmatprep.subr.mxu0 0.0
    %699 = vmatpush1.msra.mxu0 0.0
    %700 = vmatprep.subr.mxu0 0.0
    %701 = vmatpush1.msra.mxu0 0.0
    %702 = vmatprep.subr.mxu0 0.0
    %703 = vmatpush1.msra.mxu0 0.0
    %704 = vmatprep.subr.mxu0 0.0
    %705 = vmatpush1.msra.mxu0 0.0
    %706 = vmatprep.subr.mxu0 0.0
    %707 = vmatpush1.msra.mxu0 0.0
    %708 = vmatprep.subr.mxu0 0.0
    %709 = vmatpush1.msra.mxu0 0.0
    %710 = vmatprep.subr.mxu0 0.0
    %711 = vmatpush1.msra.mxu0 0.0
    %712 = vmatprep.subr.mxu0 0.0
    %713 = vmatpush1.msra.mxu0 0.0
    %714 = vmatprep.subr.mxu0 0.0
    %715 = vmatpush1.msra.mxu0 0.0
    %716 = vmatprep.subr.mxu0 0.0
    %717 = vmatpush1.msra.mxu0 0.0
    %718 = vmatprep.subr.mxu0 0.0
    %719 = vmatpush1.msra.mxu0 0.0
    %720 = vmatprep.subr.mxu0 0.0
    %721 = vmatpush1.msra.mxu0 0.0
    %722 = vmatprep.subr.mxu0 0.0
    %723 = vmatpush1.msra.mxu0 0.0
    %724 = vmatprep.subr.mxu0 0.0
    %725 = vmatpush1.msra.mxu0 0.0
    %726 = vmatprep.mubr.f32.mxu0 0.0
    %727 = vmatmul.mubr.f32.gmra.mrb[0].mxu0 %v660
    %v728 = vpop.f32.mrb[0].mxu0
    %v729 = vadd.f32 0.0, %v728
    %v730 = vpop.f32.mrb[0].mxu0
    %731 = vdwg.mxu0
    %v732 = vmul.f32 %v729, 0.022727273
    %v734 = vsel %vm259, %v647, 0
    %736 = vmatprep.subr.mxu0 0.0
    %737 = vmatpush1.msra.mxu0 %v648
    %738 = vmatprep.subr.mxu0 0.0
    %739 = vmatpush1.msra.mxu0 %v649
    %740 = vmatprep.subr.mxu0 0.0
    %741 = vmatpush1.msra.mxu0 %v650
    %742 = vmatprep.subr.mxu0 0.0
    %743 = vmatpush1.msra.mxu0 %v651
    %744 = vmatprep.subr.mxu0 0.0
    %745 = vmatpush1.msra.mxu0 %v652
    %746 = vmatprep.subr.mxu0 0.0
    %747 = vmatpush1.msra.mxu0 %v653
    %748 = vmatprep.subr.mxu0 0.0
    %749 = vmatpush1.msra.mxu0 %v654
    %750 = vmatprep.subr.mxu0 0.0
    %751 = vmatpush1.msra.mxu0 %v655
    %752 = vmatprep.subr.mxu0 0.0
    %753 = vmatpush1.msra.mxu0 %v656
    %754 = vmatprep.subr.mxu0 0.0
    %755 = vmatpush1.msra.mxu0 %v657
    %756 = vmatprep.subr.mxu0 0.0
    %757 = vmatpush1.msra.mxu0 %v658
    %758 = vmatprep.subr.mxu0 0.0
    %759 = vmatpush1.msra.mxu0 0.0
    %760 = vmatprep.subr.mxu0 0.0
    %761 = vmatpush1.msra.mxu0 0.0
    %762 = vmatprep.subr.mxu0 0.0
    %763 = vmatpush1.msra.mxu0 0.0
    %764 = vmatprep.subr.mxu0 0.0
    %765 = vmatpush1.msra.mxu0 0.0
    %766 = vmatprep.subr.mxu0 0.0
    %767 = vmatpush1.msra.mxu0 0.0
    %768 = vmatprep.subr.mxu0 0.0
    %769 = vmatpush1.msra.mxu0 0.0
    %770 = vmatprep.subr.mxu0 0.0
    %771 = vmatpush1.msra.mxu0 0.0
    %772 = vmatprep.subr.mxu0 0.0
    %773 = vmatpush1.msra.mxu0 0.0
    %774 = vmatprep.subr.mxu0 0.0
    %775 = vmatpush1.msra.mxu0 0.0
    %776 = vmatprep.subr.mxu0 0.0
    %777 = vmatpush1.msra.mxu0 0.0
    %778 = vmatprep.subr.mxu0 0.0
    %779 = vmatpush1.msra.mxu0 0.0
    %780 = vmatprep.subr.mxu0 0.0
    %781 = vmatpush1.msra.mxu0 0.0
    %782 = vmatprep.subr.mxu0 0.0
    %783 = vmatpush1.msra.mxu0 0.0
    %784 = vmatprep.subr.mxu0 0.0
    %785 = vmatpush1.msra.mxu0 0.0
    %786 = vmatprep.subr.mxu0 0.0
    %787 = vmatpush1.msra.mxu0 0.0
    %788 = vmatprep.subr.mxu0 0.0
    %789 = vmatpush1.msra.mxu0 0.0
    %790 = vmatprep.subr.mxu0 0.0
    %791 = vmatpush1.msra.mxu0 0.0
    %792 = vmatprep.subr.mxu0 0.0
    %793 = vmatpush1.msra.mxu0 0.0
    %794 = vmatprep.subr.mxu0 0.0
    %795 = vmatpush1.msra.mxu0 0.0
    %796 = vmatprep.subr.mxu0 0.0
    %797 = vmatpush1.msra.mxu0 0.0
    %798 = vmatprep.subr.mxu0 0.0
    %799 = vmatpush1.msra.mxu0 0.0
    %800 = vmatprep.mubr.f32.mxu0 0.0
    %801 = vmatmul.mubr.f32.gmra.mrb[0].mxu0 %v734
    %v802 = vpop.f32.mrb[0].mxu0
    %v803 = vadd.f32 0.0, %v802
    %v804 = vpop.f32.mrb[0].mxu0
    %805 = vdwg.mxu0
    %v806 = vmul.f32 %v803, 0.022727273
    %v807 = vmul.f32 %v732, %v732
    %v808 = vsub.f32 %v806, %v807
    %v809 = vld [vmem:[%s8] sm:$0x1]
    %v810 = vadd.f32 %v808, 1e-05
    %v811 = vrsqrt.pop %v810
    %v812 = vmul.f32 %v809, %v811
    %v813 = vld [vmem:[#allocation7] sm:$0x1]
    %v814 = vmul.f32 %v732, %v812
    %v815 = vsub.f32 %v813, %v814
    %v817 = vlaneseq
    %v818 = vshrl.u32 %v817, 7
    %v819 = vsub.s32 0, %v818
    %v820 = vrot.slane %v812, %v819
    %v822 = vmul.f32 %v630, %v820
    %v824 = vlaneseq
    %v825 = vshrl.u32 %v824, 7
    %v826 = vsub.s32 0, %v825
    %v827 = vrot.slane %v815, %v826
    %v829 = vadd.f32 %v822, %v827
    %v830 = vmax.f32 %v829, 0.0
    %v831 = vand.u32 2147483647, %v829
    %v832 = vsub.f32 0.0, %v831
    %v833 = vmul.f32 %v832, 1.442695
    %v834 = vpow.pop %v833
    %v835 = vadd.f32 %v834, 1.0
    %v836 = vlog2.pop %v835
    %v837 = vmul.f32 %v836, 0.6931472
    %v838 = vadd.f32 %v830, %v837
    %v839 = vtanh.pop %v838
    %v840 = vmul.f32 %v829, %v839
    %v841 = vld [vmem:[#allocation10] sm:$0xff]
    %v842 = vld [vmem:[#allocation10 + $0x8] sm:$0xff]
    %v843 = vld [vmem:[#allocation10 + $0x10] sm:$0xff]
    %v844 = vld [vmem:[#allocation10 + $0x18] sm:$0xff]
    %v845 = vld [vmem:[#allocation10 + $0x20] sm:$0xff]
    %v846 = vld [vmem:[#allocation10 + $0x28] sm:$0xff]
    %v847 = vld [vmem:[#allocation10 + $0x30] sm:$0xff]
    %v848 = vld [vmem:[#allocation10 + $0x38] sm:$0xff]
    %v849 = vld [vmem:[#allocation10 + $0x40] sm:$0xff]
    %v850 = vld [vmem:[#allocation10 + $0x48] sm:$0xff]
    %v851 = vld [vmem:[#allocation10 + $0x50] sm:$0xff]
    %v852 = vld [vmem:[#allocation11] sm:$0x1]
    %v854 = vlaneseq
    %v855 = vshrl.u32 %v854, 7
    %v856 = vsub.s32 0, %v855
    %v857 = vrot.slane %v852, %v856
    %v860 = vsel %vm259, %v840, 0
    %862 = vmatprep.subr.mxu0 0.0
    %863 = vmatpush1.msra.mxu0 %v841
    %864 = vmatprep.subr.mxu0 0.0
    %865 = vmatpush1.msra.mxu0 %v842
    %866 = vmatprep.subr.mxu0 0.0
    %867 = vmatpush1.msra.mxu0 %v843
    %868 = vmatprep.subr.mxu0 0.0
    %869 = vmatpush1.msra.mxu0 %v844
    %870 = vmatprep.subr.mxu0 0.0
    %871 = vmatpush1.msra.mxu0 %v845
    %872 = vmatprep.subr.mxu0 0.0
    %873 = vmatpush1.msra.mxu0 %v846
    %874 = vmatprep.subr.mxu0 0.0
    %875 = vmatpush1.msra.mxu0 %v847
    %876 = vmatprep.subr.mxu0 0.0
    %877 = vmatpush1.msra.mxu0 %v848
    %878 = vmatprep.subr.mxu0 0.0
    %879 = vmatpush1.msra.mxu0 %v849
    %880 = vmatprep.subr.mxu0 0.0
    %881 = vmatpush1.msra.mxu0 %v850
    %882 = vmatprep.subr.mxu0 0.0
    %883 = vmatpush1.msra.mxu0 %v851
    %884 = vmatprep.subr.mxu0 0.0
    %885 = vmatpush1.msra.mxu0 0.0
    %886 = vmatprep.subr.mxu0 0.0
    %887 = vmatpush1.msra.mxu0 0.0
    %888 = vmatprep.subr.mxu0 0.0
    %889 = vmatpush1.msra.mxu0 0.0
    %890 = vmatprep.subr.mxu0 0.0
    %891 = vmatpush1.msra.mxu0 0.0
    %892 = vmatprep.subr.mxu0 0.0
    %893 = vmatpush1.msra.mxu0 0.0
    %894 = vmatprep.subr.mxu0 0.0
    %895 = vmatpush1.msra.mxu0 0.0
    %896 = vmatprep.subr.mxu0 0.0
    %897 = vmatpush1.msra.mxu0 0.0
    %898 = vmatprep.subr.mxu0 0.0
    %899 = vmatpush1.msra.mxu0 0.0
    %900 = vmatprep.subr.mxu0 0.0
    %901 = vmatpush1.msra.mxu0 0.0
    %902 = vmatprep.subr.mxu0 0.0
    %903 = vmatpush1.msra.mxu0 0.0
    %904 = vmatprep.subr.mxu0 0.0
    %905 = vmatpush1.msra.mxu0 0.0
    %906 = vmatprep.subr.mxu0 0.0
    %907 = vmatpush1.msra.mxu0 0.0
    %908 = vmatprep.subr.mxu0 0.0
    %909 = vmatpush1.msra.mxu0 0.0
    %910 = vmatprep.subr.mxu0 0.0
    %911 = vmatpush1.msra.mxu0 0.0
    %912 = vmatprep.subr.mxu0 0.0
    %913 = vmatpush1.msra.mxu0 0.0
    %914 = vmatprep.subr.mxu0 0.0
    %915 = vmatpush1.msra.mxu0 0.0
    %916 = vmatprep.subr.mxu0 0.0
    %917 = vmatpush1.msra.mxu0 0.0
    %918 = vmatprep.subr.mxu0 0.0
    %919 = vmatpush1.msra.mxu0 0.0
    %920 = vmatprep.subr.mxu0 0.0
    %921 = vmatpush1.msra.mxu0 0.0
    %922 = vmatprep.subr.mxu0 0.0
    %923 = vmatpush1.msra.mxu0 0.0
    %924 = vmatprep.subr.mxu0 0.0
    %925 = vmatpush1.msra.mxu0 0.0
    %926 = vmatprep.mubr.f32.mxu0 0.0
    %927 = vmatmul.mubr.f32.gmra.mrb[0].mxu0 %v860
    %v928 = vpop.f32.mrb[0].mxu0
    %v929 = vadd.f32 %v857, %v928
    %v930 = vpop.f32.mrb[0].mxu0
    %931 = vdwg.mxu0
    %v932 = vsel %vm333, %v929, 0.0
    %v933 = vrot.slane %v932, 4
    %v934 = vadd.f32 %v932, %v933
    %v935 = vrot.slane %v934, 2
    %v936 = vadd.f32 %v934, %v935
    %v937 = vrot.slane %v936, 1
    %v938 = vadd.f32 %v936, %v937
    %v939 = vmul.f32 %v929, %v929
    %v940 = vsel %vm333, %v939, 0.0
    %v941 = vrot.slane %v940, 4
    %v942 = vadd.f32 %v940, %v941
    %v943 = vrot.slane %v942, 2
    %v944 = vadd.f32 %v942, %v943
    %v945 = vrot.slane %v944, 1
    %v946 = vadd.f32 %v944, %v945
    %v947 = vld [vmem:[#allocation16] sm:$0xff]
    %v948 = vld [vmem:[#allocation16 + $0x8] sm:$0xff]
    %v949 = vld [vmem:[#allocation16 + $0x10] sm:$0xff]
    %v950 = vld [vmem:[#allocation16 + $0x18] sm:$0xff]
    %v951 = vld [vmem:[#allocation16 + $0x20] sm:$0xff]
    %v952 = vld [vmem:[#allocation16 + $0x28] sm:$0xff]
    %v953 = vld [vmem:[#allocation16 + $0x30] sm:$0xff]
    %v954 = vld [vmem:[#allocation16 + $0x38] sm:$0xff]
    %v955 = vld [vmem:[#allocation16 + $0x40] sm:$0xff]
    %v956 = vld [vmem:[#allocation16 + $0x48] sm:$0xff]
    %v957 = vld [vmem:[#allocation16 + $0x50] sm:$0xff]
    %v959 = vsel %vm259, %v938, 0
    %961 = vmatprep.subr.mxu0 0.0
    %962 = vmatpush1.msra.mxu0 %v947
    %963 = vmatprep.subr.mxu0 0.0
    %964 = vmatpush1.msra.mxu0 %v948
    %965 = vmatprep.subr.mxu0 0.0
    %966 = vmatpush1.msra.mxu0 %v949
    %967 = vmatprep.subr.mxu0 0.0
    %968 = vmatpush1.msra.mxu0 %v950
    %969 = vmatprep.subr.mxu0 0.0
    %970 = vmatpush1.msra.mxu0 %v951
    %971 = vmatprep.subr.mxu0 0.0
    %972 = vmatpush1.msra.mxu0 %v952
    %973 = vmatprep.subr.mxu0 0.0
    %974 = vmatpush1.msra.mxu0 %v953
    %975 = vmatprep.subr.mxu0 0.0
    %976 = vmatpush1.msra.mxu0 %v954
    %977 = vmatprep.subr.mxu0 0.0
    %978 = vmatpush1.msra.mxu0 %v955
    %979 = vmatprep.subr.mxu0 0.0
    %980 = vmatpush1.msra.mxu0 %v956
    %981 = vmatprep.subr.mxu0 0.0
    %982 = vmatpush1.msra.mxu0 %v957
    %983 = vmatprep.subr.mxu0 0.0
    %984 = vmatpush1.msra.mxu0 0.0
    %985 = vmatprep.subr.mxu0 0.0
    %986 = vmatpush1.msra.mxu0 0.0
    %987 = vmatprep.subr.mxu0 0.0
    %988 = vmatpush1.msra.mxu0 0.0
    %989 = vmatprep.subr.mxu0 0.0
    %990 = vmatpush1.msra.mxu0 0.0
    %991 = vmatprep.subr.mxu0 0.0
    %992 = vmatpush1.msra.mxu0 0.0
    %993 = vmatprep.subr.mxu0 0.0
    %994 = vmatpush1.msra.mxu0 0.0
    %995 = vmatprep.subr.mxu0 0.0
    %996 = vmatpush1.msra.mxu0 0.0
    %997 = vmatprep.subr.mxu0 0.0
    %998 = vmatpush1.msra.mxu0 0.0
    %999 = vmatprep.subr.mxu0 0.0
    %1000 = vmatpush1.msra.mxu0 0.0
    %1001 = vmatprep.subr.mxu0 0.0
    %1002 = vmatpush1.msra.mxu0 0.0
    %1003 = vmatprep.subr.mxu0 0.0
    %1004 = vmatpush1.msra.mxu0 0.0
    %1005 = vmatprep.subr.mxu0 0.0
    %1006 = vmatpush1.msra.mxu0 0.0
    %1007 = vmatprep.subr.mxu0 0.0
    %1008 = vmatpush1.msra.mxu0 0.0
    %1009 = vmatprep.subr.mxu0 0.0
    %1010 = vmatpush1.msra.mxu0 0.0
    %1011 = vmatprep.subr.mxu0 0.0
    %1012 = vmatpush1.msra.mxu0 0.0
    %1013 = vmatprep.subr.mxu0 0.0
    %1014 = vmatpush1.msra.mxu0 0.0
    %1015 = vmatprep.subr.mxu0 0.0
    %1016 = vmatpush1.msra.mxu0 0.0
    %1017 = vmatprep.subr.mxu0 0.0
    %1018 = vmatpush1.msra.mxu0 0.0
    %1019 = vmatprep.subr.mxu0 0.0
    %1020 = vmatpush1.msra.mxu0 0.0
    %1021 = vmatprep.subr.mxu0 0.0
    %1022 = vmatpush1.msra.mxu0 0.0
    %1023 = vmatprep.subr.mxu0 0.0
    %1024 = vmatpush1.msra.mxu0 0.0
    %1025 = vmatprep.mubr.f32.mxu0 0.0
    %1026 = vmatmul.mubr.f32.gmra.mrb[0].mxu0 %v959
    %v1027 = vpop.f32.mrb[0].mxu0
    %v1028 = vadd.f32 0.0, %v1027
    %v1029 = vpop.f32.mrb[0].mxu0
    %1030 = vdwg.mxu0
    %v1031 = vmul.f32 %v1028, 0.045454547
    %v1033 = vsel %vm259, %v946, 0
    %1035 = vmatprep.subr.mxu0 0.0
    %1036 = vmatpush1.msra.mxu0 %v947
    %1037 = vmatprep.subr.mxu0 0.0
    %1038 = vmatpush1.msra.mxu0 %v948
    %1039 = vmatprep.subr.mxu0 0.0
    %1040 = vmatpush1.msra.mxu0 %v949
    %1041 = vmatprep.subr.mxu0 0.0
    %1042 = vmatpush1.msra.mxu0 %v950
    %1043 = vmatprep.subr.mxu0 0.0
    %1044 = vmatpush1.msra.mxu0 %v951
    %1045 = vmatprep.subr.mxu0 0.0
    %1046 = vmatpush1.msra.mxu0 %v952
    %1047 = vmatprep.subr.mxu0 0.0
    %1048 = vmatpush1.msra.mxu0 %v953
    %1049 = vmatprep.subr.mxu0 0.0
    %1050 = vmatpush1.msra.mxu0 %v954
    %1051 = vmatprep.subr.mxu0 0.0
    %1052 = vmatpush1.msra.mxu0 %v955
    %1053 = vmatprep.subr.mxu0 0.0
    %1054 = vmatpush1.msra.mxu0 %v956
    %1055 = vmatprep.subr.mxu0 0.0
    %1056 = vmatpush1.msra.mxu0 %v957
    %1057 = vmatprep.subr.mxu0 0.0
    %1058 = vmatpush1.msra.mxu0 0.0
    %1059 = vmatprep.subr.mxu0 0.0
    %1060 = vmatpush1.msra.mxu0 0.0
    %1061 = vmatprep.subr.mxu0 0.0
    %1062 = vmatpush1.msra.mxu0 0.0
    %1063 = vmatprep.subr.mxu0 0.0
    %1064 = vmatpush1.msra.mxu0 0.0
    %1065 = vmatprep.subr.mxu0 0.0
    %1066 = vmatpush1.msra.mxu0 0.0
    %1067 = vmatprep.subr.mxu0 0.0
    %1068 = vmatpush1.msra.mxu0 0.0
    %1069 = vmatprep.subr.mxu0 0.0
    %1070 = vmatpush1.msra.mxu0 0.0
    %1071 = vmatprep.subr.mxu0 0.0
    %1072 = vmatpush1.msra.mxu0 0.0
    %1073 = vmatprep.subr.mxu0 0.0
    %1074 = vmatpush1.msra.mxu0 0.0
    %1075 = vmatprep.subr.mxu0 0.0
    %1076 = vmatpush1.msra.mxu0 0.0
    %1077 = vmatprep.subr.mxu0 0.0
    %1078 = vmatpush1.msra.mxu0 0.0
    %1079 = vmatprep.subr.mxu0 0.0
    %1080 = vmatpush1.msra.mxu0 0.0
    %1081 = vmatprep.subr.mxu0 0.0
    %1082 = vmatpush1.msra.mxu0 0.0
    %1083 = vmatprep.subr.mxu0 0.0
    %1084 = vmatpush1.msra.mxu0 0.0
    %1085 = vmatprep.subr.mxu0 0.0
    %1086 = vmatpush1.msra.mxu0 0.0
    %1087 = vmatprep.subr.mxu0 0.0
    %1088 = vmatpush1.msra.mxu0 0.0
    %1089 = vmatprep.subr.mxu0 0.0
    %1090 = vmatpush1.msra.mxu0 0.0
    %1091 = vmatprep.subr.mxu0 0.0
    %1092 = vmatpush1.msra.mxu0 0.0
    %1093 = vmatprep.subr.mxu0 0.0
    %1094 = vmatpush1.msra.mxu0 0.0
    %1095 = vmatprep.subr.mxu0 0.0
    %1096 = vmatpush1.msra.mxu0 0.0
    %1097 = vmatprep.subr.mxu0 0.0
    %1098 = vmatpush1.msra.mxu0 0.0
    %1099 = vmatprep.mubr.f32.mxu0 0.0
    %1100 = vmatmul.mubr.f32.gmra.mrb[0].mxu0 %v1033
    %v1101 = vpop.f32.mrb[0].mxu0
    %v1102 = vadd.f32 0.0, %v1101
    %v1103 = vpop.f32.mrb[0].mxu0
    %1104 = vdwg.mxu0
    %v1105 = vmul.f32 %v1102, 0.045454547
    %v1106 = vmul.f32 %v1031, %v1031
    %v1107 = vsub.f32 %v1105, %v1106
    %v1108 = vld [vmem:[#allocation13] sm:$0x1]
    %v1109 = vadd.f32 %v1107, 1e-05
    %v1110 = vrsqrt.pop %v1109
    %v1111 = vmul.f32 %v1108, %v1110
    %v1112 = vld [vmem:[#allocation14] sm:$0x1]
    %v1113 = vmul.f32 %v1031, %v1111
    %v1114 = vsub.f32 %v1112, %v1113
    %v1116 = vlaneseq
    %v1117 = vshrl.u32 %v1116, 7
    %v1118 = vsub.s32 0, %v1117
    %v1119 = vrot.slane %v1111, %v1118
    %v1121 = vmul.f32 %v929, %v1119
    %v1123 = vlaneseq
    %v1124 = vshrl.u32 %v1123, 7
    %v1125 = vsub.s32 0, %v1124
    %v1126 = vrot.slane %v1114, %v1125
    %v1128 = vadd.f32 %v1121, %v1126
    %v1129 = vmax.f32 %v1128, 0.0
    %v1130 = vand.u32 2147483647, %v1128
    %v1131 = vsub.f32 0.0, %v1130
    %v1132 = vmul.f32 %v1131, 1.442695
    %v1133 = vpow.pop %v1132
    %v1134 = vadd.f32 %v1133, 1.0
    %v1135 = vlog2.pop %v1134
    %v1136 = vmul.f32 %v1135, 0.6931472
    %v1137 = vadd.f32 %v1129, %v1136
    %v1138 = vtanh.pop %v1137
    %v1139 = vmul.f32 %v1128, %v1138
    %v1140 = vld [vmem:[#allocation17] sm:$0xff]
    %v1141 = vld [vmem:[#allocation17 + $0x8] sm:$0xff]
    %v1142 = vld [vmem:[#allocation17 + $0x10] sm:$0xff]
    %v1143 = vld [vmem:[#allocation17 + $0x18] sm:$0xff]
    %v1144 = vld [vmem:[#allocation17 + $0x20] sm:$0xff]
    %v1145 = vld [vmem:[#allocation17 + $0x28] sm:$0xff]
    %v1146 = vld [vmem:[#allocation17 + $0x30] sm:$0xff]
    %v1147 = vld [vmem:[#allocation17 + $0x38] sm:$0xff]
    %v1148 = vld [vmem:[#allocation17 + $0x40] sm:$0xff]
    %v1149 = vld [vmem:[#allocation17 + $0x48] sm:$0xff]
    %v1150 = vld [vmem:[#allocation17 + $0x50] sm:$0xff]
    %v1151 = vld [vmem:[#allocation19] sm:$0x1]
    %v1153 = vlaneseq
    %v1154 = vshrl.u32 %v1153, 7
    %v1155 = vsub.s32 0, %v1154
    %v1156 = vrot.slane %v1151, %v1155
    %v1159 = vsel %vm259, %v1139, 0
    %1161 = vmatprep.subr.mxu0 0.0
    %1162 = vmatpush1.msra.mxu0 %v1140
    %1163 = vmatprep.subr.mxu0 0.0
    %1164 = vmatpush1.msra.mxu0 %v1141
    %1165 = vmatprep.subr.mxu0 0.0
    %1166 = vmatpush1.msra.mxu0 %v1142
    %1167 = vmatprep.subr.mxu0 0.0
    %1168 = vmatpush1.msra.mxu0 %v1143
    %1169 = vmatprep.subr.mxu0 0.0
    %1170 = vmatpush1.msra.mxu0 %v1144
    %1171 = vmatprep.subr.mxu0 0.0
    %1172 = vmatpush1.msra.mxu0 %v1145
    %1173 = vmatprep.subr.mxu0 0.0
    %1174 = vmatpush1.msra.mxu0 %v1146
    %1175 = vmatprep.subr.mxu0 0.0
    %1176 = vmatpush1.msra.mxu0 %v1147
    %1177 = vmatprep.subr.mxu0 0.0
    %1178 = vmatpush1.msra.mxu0 %v1148
    %1179 = vmatprep.subr.mxu0 0.0
    %1180 = vmatpush1.msra.mxu0 %v1149
    %1181 = vmatprep.subr.mxu0 0.0
    %1182 = vmatpush1.msra.mxu0 %v1150
    %1183 = vmatprep.subr.mxu0 0.0
    %1184 = vmatpush1.msra.mxu0 0.0
    %1185 = vmatprep.subr.mxu0 0.0
    %1186 = vmatpush1.msra.mxu0 0.0
    %1187 = vmatprep.subr.mxu0 0.0
    %1188 = vmatpush1.msra.mxu0 0.0
    %1189 = vmatprep.subr.mxu0 0.0
    %1190 = vmatpush1.msra.mxu0 0.0
    %1191 = vmatprep.subr.mxu0 0.0
    %1192 = vmatpush1.msra.mxu0 0.0
    %1193 = vmatprep.subr.mxu0 0.0
    %1194 = vmatpush1.msra.mxu0 0.0
    %1195 = vmatprep.subr.mxu0 0.0
    %1196 = vmatpush1.msra.mxu0 0.0
    %1197 = vmatprep.subr.mxu0 0.0
    %1198 = vmatpush1.msra.mxu0 0.0
    %1199 = vmatprep.subr.mxu0 0.0
    %1200 = vmatpush1.msra.mxu0 0.0
    %1201 = vmatprep.subr.mxu0 0.0
    %1202 = vmatpush1.msra.mxu0 0.0
    %1203 = vmatprep.subr.mxu0 0.0
    %1204 = vmatpush1.msra.mxu0 0.0
    %1205 = vmatprep.subr.mxu0 0.0
    %1206 = vmatpush1.msra.mxu0 0.0
    %1207 = vmatprep.subr.mxu0 0.0
    %1208 = vmatpush1.msra.mxu0 0.0
    %1209 = vmatprep.subr.mxu0 0.0
    %1210 = vmatpush1.msra.mxu0 0.0
    %1211 = vmatprep.subr.mxu0 0.0
    %1212 = vmatpush1.msra.mxu0 0.0
    %1213 = vmatprep.subr.mxu0 0.0
    %1214 = vmatpush1.msra.mxu0 0.0
    %1215 = vmatprep.subr.mxu0 0.0
    %1216 = vmatpush1.msra.mxu0 0.0
    %1217 = vmatprep.subr.mxu0 0.0
    %1218 = vmatpush1.msra.mxu0 0.0
    %1219 = vmatprep.subr.mxu0 0.0
    %1220 = vmatpush1.msra.mxu0 0.0
    %1221 = vmatprep.subr.mxu0 0.0
    %1222 = vmatpush1.msra.mxu0 0.0
    %1223 = vmatprep.subr.mxu0 0.0
    %1224 = vmatpush1.msra.mxu0 0.0
    %1225 = vmatprep.mubr.f32.mxu0 0.0
    %1226 = vmatmul.mubr.f32.gmra.mrb[0].mxu0 %v1159
    %v1227 = vpop.f32.mrb[0].mxu0
    %v1228 = vadd.f32 %v1156, %v1227
    %v1229 = vpop.f32.mrb[0].mxu0
    %1230 = vdwg.mxu0
    %vm1231 = vcmask 779264
    %v1232 = vsel %vm1231, %v1228, 0.0
    %v1233 = vrot.slane %v1232, 4
    %v1234 = vadd.f32 %v1232, %v1233
    %v1235 = vrot.slane %v1234, 2
    %v1236 = vadd.f32 %v1234, %v1235
    %v1237 = vrot.slane %v1236, 1
    %v1238 = vadd.f32 %v1236, %v1237
    %v1239 = vmul.f32 %v1228, %v1228
    %v1240 = vsel %vm1231, %v1239, 0.0
    %v1241 = vrot.slane %v1240, 4
    %v1242 = vadd.f32 %v1240, %v1241
    %v1243 = vrot.slane %v1242, 2
    %v1244 = vadd.f32 %v1242, %v1243
    %v1245 = vrot.slane %v1244, 1
    %v1246 = vadd.f32 %v1244, %v1245
    %v1247 = vld [vmem:[%s20] sm:$0xff]
    %v1248 = vld [vmem:[%s20 + $0x8] sm:$0xff]
    %v1249 = vld [vmem:[%s20 + $0x10] sm:$0xff]
    %v1250 = vld [vmem:[%s20 + $0x18] sm:$0xff]
    %v1251 = vld [vmem:[%s20 + $0x20] sm:$0xff]
    %v1252 = vld [vmem:[%s20 + $0x28] sm:$0xff]
    %v1253 = vld [vmem:[%s20 + $0x30] sm:$0xff]
    %v1254 = vld [vmem:[%s20 + $0x38] sm:$0xff]
    %v1255 = vld [vmem:[%s20 + $0x40] sm:$0xff]
    %v1256 = vld [vmem:[%s20 + $0x48] sm:$0xff]
    %v1257 = vld [vmem:[%s20 + $0x50] sm:$0xff]
    %v1258 = vld [vmem:[%s20 + $0x58] sm:$0xff]
    %vm1259 = vcmask 785408
    %v1261 = vsel %vm1259, %v1238, 0
    %1263 = vmatprep.subr.mxu0 0.0
    %1264 = vmatpush1.msra.mxu0 %v1247
    %1265 = vmatprep.subr.mxu0 0.0
    %1266 = vmatpush1.msra.mxu0 %v1248
    %1267 = vmatprep.subr.mxu0 0.0
    %1268 = vmatpush1.msra.mxu0 %v1249
    %1269 = vmatprep.subr.mxu0 0.0
    %1270 = vmatpush1.msra.mxu0 %v1250
    %1271 = vmatprep.subr.mxu0 0.0
    %1272 = vmatpush1.msra.mxu0 %v1251
    %1273 = vmatprep.subr.mxu0 0.0
    %1274 = vmatpush1.msra.mxu0 %v1252
    %1275 = vmatprep.subr.mxu0 0.0
    %1276 = vmatpush1.msra.mxu0 %v1253
    %1277 = vmatprep.subr.mxu0 0.0
    %1278 = vmatpush1.msra.mxu0 %v1254
    %1279 = vmatprep.subr.mxu0 0.0
    %1280 = vmatpush1.msra.mxu0 %v1255
    %1281 = vmatprep.subr.mxu0 0.0
    %1282 = vmatpush1.msra.mxu0 %v1256
    %1283 = vmatprep.subr.mxu0 0.0
    %1284 = vmatpush1.msra.mxu0 %v1257
    %1285 = vmatprep.subr.mxu0 0.0
    %1286 = vmatpush1.msra.mxu0 %v1258
    %1287 = vmatprep.subr.mxu0 0.0
    %1288 = vmatpush1.msra.mxu0 0.0
    %1289 = vmatprep.subr.mxu0 0.0
    %1290 = vmatpush1.msra.mxu0 0.0
    %1291 = vmatprep.subr.mxu0 0.0
    %1292 = vmatpush1.msra.mxu0 0.0
    %1293 = vmatprep.subr.mxu0 0.0
    %1294 = vmatpush1.msra.mxu0 0.0
    %1295 = vmatprep.subr.mxu0 0.0
    %1296 = vmatpush1.msra.mxu0 0.0
    %1297 = vmatprep.subr.mxu0 0.0
    %1298 = vmatpush1.msra.mxu0 0.0
    %1299 = vmatprep.subr.mxu0 0.0
    %1300 = vmatpush1.msra.mxu0 0.0
    %1301 = vmatprep.subr.mxu0 0.0
    %1302 = vmatpush1.msra.mxu0 0.0
    %1303 = vmatprep.subr.mxu0 0.0
    %1304 = vmatpush1.msra.mxu0 0.0
    %1305 = vmatprep.subr.mxu0 0.0
    %1306 = vmatpush1.msra.mxu0 0.0
    %1307 = vmatprep.subr.mxu0 0.0
    %1308 = vmatpush1.msra.mxu0 0.0
    %1309 = vmatprep.subr.mxu0 0.0
    %1310 = vmatpush1.msra.mxu0 0.0
    %1311 = vmatprep.subr.mxu0 0.0
    %1312 = vmatpush1.msra.mxu0 0.0
    %1313 = vmatprep.subr.mxu0 0.0
    %1314 = vmatpush1.msra.mxu0 0.0
    %1315 = vmatprep.subr.mxu0 0.0
    %1316 = vmatpush1.msra.mxu0 0.0
    %1317 = vmatprep.subr.mxu0 0.0
    %1318 = vmatpush1.msra.mxu0 0.0
    %1319 = vmatprep.subr.mxu0 0.0
    %1320 = vmatpush1.msra.mxu0 0.0
    %1321 = vmatprep.subr.mxu0 0.0
    %1322 = vmatpush1.msra.mxu0 0.0
    %1323 = vmatprep.subr.mxu0 0.0
    %1324 = vmatpush1.msra.mxu0 0.0
    %1325 = vmatprep.subr.mxu0 0.0
    %1326 = vmatpush1.msra.mxu0 0.0
    %1327 = vmatprep.mubr.f32.mxu0 0.0
    %1328 = vmatmul.mubr.f32.gmra.mrb[0].mxu0 %v1261
    %v1329 = vpop.f32.mrb[0].mxu0
    %v1330 = vadd.f32 0.0, %v1329
    %v1331 = vpop.f32.mrb[0].mxu0
    %1332 = vdwg.mxu0
    %v1333 = vmul.f32 %v1330, 0.083333336
    %v1335 = vsel %vm1259, %v1246, 0
    %1337 = vmatprep.subr.mxu0 0.0
    %1338 = vmatpush1.msra.mxu0 %v1247
    %1339 = vmatprep.subr.mxu0 0.0
    %1340 = vmatpush1.msra.mxu0 %v1248
    %1341 = vmatprep.subr.mxu0 0.0
    %1342 = vmatpush1.msra.mxu0 %v1249
    %1343 = vmatprep.subr.mxu0 0.0
    %1344 = vmatpush1.msra.mxu0 %v1250
    %1345 = vmatprep.subr.mxu0 0.0
    %1346 = vmatpush1.msra.mxu0 %v1251
    %1347 = vmatprep.subr.mxu0 0.0
    %1348 = vmatpush1.msra.mxu0 %v1252
    %1349 = vmatprep.subr.mxu0 0.0
    %1350 = vmatpush1.msra.mxu0 %v1253
    %1351 = vmatprep.subr.mxu0 0.0
    %1352 = vmatpush1.msra.mxu0 %v1254
    %1353 = vmatprep.subr.mxu0 0.0
    %1354 = vmatpush1.msra.mxu0 %v1255
    %1355 = vmatprep.subr.mxu0 0.0
    %1356 = vmatpush1.msra.mxu0 %v1256
    %1357 = vmatprep.subr.mxu0 0.0
    %1358 = vmatpush1.msra.mxu0 %v1257
    %1359 = vmatprep.subr.mxu0 0.0
    %1360 = vmatpush1.msra.mxu0 %v1258
    %1361 = vmatprep.subr.mxu0 0.0
    %1362 = vmatpush1.msra.mxu0 0.0
    %1363 = vmatprep.subr.mxu0 0.0
    %1364 = vmatpush1.msra.mxu0 0.0
    %1365 = vmatprep.subr.mxu0 0.0
    %1366 = vmatpush1.msra.mxu0 0.0
    %1367 = vmatprep.subr.mxu0 0.0
    %1368 = vmatpush1.msra.mxu0 0.0
    %1369 = vmatprep.subr.mxu0 0.0
    %1370 = vmatpush1.msra.mxu0 0.0
    %1371 = vmatprep.subr.mxu0 0.0
    %1372 = vmatpush1.msra.mxu0 0.0
    %1373 = vmatprep.subr.mxu0 0.0
    %1374 = vmatpush1.msra.mxu0 0.0
    %1375 = vmatprep.subr.mxu0 0.0
    %1376 = vmatpush1.msra.mxu0 0.0
    %1377 = vmatprep.subr.mxu0 0.0
    %1378 = vmatpush1.msra.mxu0 0.0
    %1379 = vmatprep.subr.mxu0 0.0
    %1380 = vmatpush1.msra.mxu0 0.0
    %1381 = vmatprep.subr.mxu0 0.0
    %1382 = vmatpush1.msra.mxu0 0.0
    %1383 = vmatprep.subr.mxu0 0.0
    %1384 = vmatpush1.msra.mxu0 0.0
    %1385 = vmatprep.subr.mxu0 0.0
    %1386 = vmatpush1.msra.mxu0 0.0
    %1387 = vmatprep.subr.mxu0 0.0
    %1388 = vmatpush1.msra.mxu0 0.0
    %1389 = vmatprep.subr.mxu0 0.0
    %1390 = vmatpush1.msra.mxu0 0.0
    %1391 = vmatprep.subr.mxu0 0.0
    %1392 = vmatpush1.msra.mxu0 0.0
    %1393 = vmatprep.subr.mxu0 0.0
    %1394 = vmatpush1.msra.mxu0 0.0
    %1395 = vmatprep.subr.mxu0 0.0
    %1396 = vmatpush1.msra.mxu0 0.0
    %1397 = vmatprep.subr.mxu0 0.0
    %1398 = vmatpush1.msra.mxu0 0.0
    %1399 = vmatprep.subr.mxu0 0.0
    %1400 = vmatpush1.msra.mxu0 0.0
    %1401 = vmatprep.mubr.f32.mxu0 0.0
    %1402 = vmatmul.mubr.f32.gmra.mrb[0].mxu0 %v1335
    %v1403 = vpop.f32.mrb[0].mxu0
    %v1404 = vadd.f32 0.0, %v1403
    %v1405 = vpop.f32.mrb[0].mxu0
    %1406 = vdwg.mxu0
    %v1407 = vmul.f32 %v1404, 0.083333336
    %v1408 = vmul.f32 %v1333, %v1333
    %v1409 = vsub.f32 %v1407, %v1408
    %v1410 = vld [vmem:[#allocation20] sm:$0x1]
    %v1411 = vadd.f32 %v1409, 1e-05
    %v1412 = vrsqrt.pop %v1411
    %v1413 = vmul.f32 %v1410, %v1412
    %v1414 = vld [vmem:[#allocation22] sm:$0x1]
    %v1415 = vmul.f32 %v1333, %v1413
    %v1416 = vsub.f32 %v1414, %v1415
    %v1418 = vlaneseq
    %v1419 = vshrl.u32 %v1418, 7
    %v1420 = vsub.s32 0, %v1419
    %v1421 = vrot.slane %v1413, %v1420
    %v1423 = vmul.f32 %v1228, %v1421
    %v1425 = vlaneseq
    %v1426 = vshrl.u32 %v1425, 7
    %v1427 = vsub.s32 0, %v1426
    %v1428 = vrot.slane %v1416, %v1427
    %v1430 = vadd.f32 %v1423, %v1428
    %v1431 = vmax.f32 %v1430, 0.0
    %v1432 = vand.u32 2147483647, %v1430
    %v1433 = vsub.f32 0.0, %v1432
    %v1434 = vmul.f32 %v1433, 1.442695
    %v1435 = vpow.pop %v1434
    %v1436 = vadd.f32 %v1435, 1.0
    %v1437 = vlog2.pop %v1436
    %v1438 = vmul.f32 %v1437, 0.6931472
    %v1439 = vadd.f32 %v1431, %v1438
    %v1440 = vtanh.pop %v1439
    %v1441 = vmul.f32 %v1430, %v1440
    %v1442 = vld [vmem:[%s21] sm:$0xff]
    %v1443 = vld [vmem:[%s21 + $0x8] sm:$0xff]
    %v1444 = vld [vmem:[%s21 + $0x10] sm:$0xff]
    %v1445 = vld [vmem:[%s21 + $0x18] sm:$0xff]
    %v1446 = vld [vmem:[%s21 + $0x20] sm:$0xff]
    %v1447 = vld [vmem:[%s21 + $0x28] sm:$0xff]
    %v1448 = vld [vmem:[%s21 + $0x30] sm:$0xff]
    %v1449 = vld [vmem:[%s21 + $0x38] sm:$0xff]
    %v1450 = vld [vmem:[%s21 + $0x40] sm:$0xff]
    %v1451 = vld [vmem:[%s21 + $0x48] sm:$0xff]
    %v1452 = vld [vmem:[%s21 + $0x50] sm:$0xff]
    %v1453 = vld [vmem:[%s21 + $0x58] sm:$0xff]
    %v1454 = vld [vmem:[%s22] sm:$0x1]
    %v1456 = vlaneseq
    %v1457 = vshrl.u32 %v1456, 7
    %v1458 = vsub.s32 0, %v1457
    %v1459 = vrot.slane %v1454, %v1458
    %v1462 = vsel %vm1259, %v1441, 0
    %1464 = vmatprep.subr.mxu0 0.0
    %1465 = vmatpush1.msra.mxu0 %v1442
    %1466 = vmatprep.subr.mxu0 0.0
    %1467 = vmatpush1.msra.mxu0 %v1443
    %1468 = vmatprep.subr.mxu0 0.0
    %1469 = vmatpush1.msra.mxu0 %v1444
    %1470 = vmatprep.subr.mxu0 0.0
    %1471 = vmatpush1.msra.mxu0 %v1445
    %1472 = vmatprep.subr.mxu0 0.0
    %1473 = vmatpush1.msra.mxu0 %v1446
    %1474 = vmatprep.subr.mxu0 0.0
    %1475 = vmatpush1.msra.mxu0 %v1447
    %1476 = vmatprep.subr.mxu0 0.0
    %1477 = vmatpush1.msra.mxu0 %v1448
    %1478 = vmatprep.subr.mxu0 0.0
    %1479 = vmatpush1.msra.mxu0 %v1449
    %1480 = vmatprep.subr.mxu0 0.0
    %1481 = vmatpush1.msra.mxu0 %v1450
    %1482 = vmatprep.subr.mxu0 0.0
    %1483 = vmatpush1.msra.mxu0 %v1451
    %1484 = vmatprep.subr.mxu0 0.0
    %1485 = vmatpush1.msra.mxu0 %v1452
    %1486 = vmatprep.subr.mxu0 0.0
    %1487 = vmatpush1.msra.mxu0 %v1453
    %1488 = vmatprep.subr.mxu0 0.0
    %1489 = vmatpush1.msra.mxu0 0.0
    %1490 = vmatprep.subr.mxu0 0.0
    %1491 = vmatpush1.msra.mxu0 0.0
    %1492 = vmatprep.subr.mxu0 0.0
    %1493 = vmatpush1.msra.mxu0 0.0
    %1494 = vmatprep.subr.mxu0 0.0
    %1495 = vmatpush1.msra.mxu0 0.0
    %1496 = vmatprep.subr.mxu0 0.0
    %1497 = vmatpush1.msra.mxu0 0.0
    %1498 = vmatprep.subr.mxu0 0.0
    %1499 = vmatpush1.msra.mxu0 0.0
    %1500 = vmatprep.subr.mxu0 0.0
    %1501 = vmatpush1.msra.mxu0 0.0
    %1502 = vmatprep.subr.mxu0 0.0
    %1503 = vmatpush1.msra.mxu0 0.0
    %1504 = vmatprep.subr.mxu0 0.0
    %1505 = vmatpush1.msra.mxu0 0.0
    %1506 = vmatprep.subr.mxu0 0.0
    %1507 = vmatpush1.msra.mxu0 0.0
    %1508 = vmatprep.subr.mxu0 0.0
    %1509 = vmatpush1.msra.mxu0 0.0
    %1510 = vmatprep.subr.mxu0 0.0
    %1511 = vmatpush1.msra.mxu0 0.0
    %1512 = vmatprep.subr.mxu0 0.0
    %1513 = vmatpush1.msra.mxu0 0.0
    %1514 = vmatprep.subr.mxu0 0.0
    %1515 = vmatpush1.msra.mxu0 0.0
    %1516 = vmatprep.subr.mxu0 0.0
    %1517 = vmatpush1.msra.mxu0 0.0
    %1518 = vmatprep.subr.mxu0 0.0
    %1519 = vmatpush1.msra.mxu0 0.0
    %1520 = vmatprep.subr.mxu0 0.0
    %1521 = vmatpush1.msra.mxu0 0.0
    %1522 = vmatprep.subr.mxu0 0.0
    %1523 = vmatpush1.msra.mxu0 0.0
    %1524 = vmatprep.subr.mxu0 0.0
    %1525 = vmatpush1.msra.mxu0 0.0
    %1526 = vmatprep.subr.mxu0 0.0
    %1527 = vmatpush1.msra.mxu0 0.0
    %1528 = vmatprep.mubr.f32.mxu0 0.0
    %1529 = vmatmul.mubr.f32.gmra.mrb[0].mxu0 %v1462
    %v1530 = vpop.f32.mrb[0].mxu0
    %v1531 = vadd.f32 %v1459, %v1530
    %v1532 = vpop.f32.mrb[0].mxu0
    %1533 = vdwg.mxu0
    %vm1534 = vcmask 123904
    %1535 = vst.msk [vmem:[#allocation23] sm:$0x3] %vm1534, %v1531
    %v1536 = vmul.f32 %v1531, %v1531
    %v1537 = vsel %vm1534, %v1536, 0.0
    %1538 = vadd.xlane.f32.xlu0 %v1537
    %v1539 = vpop.xlane.xlu0 %1538
    %vm1540 = vcmask 1041408
    %v1541 = vsel %vm1540, %v1539, 0.0
    %v1542 = vrot.slane %v1541, 4
    %v1543 = vadd.f32 %v1541, %v1542
    %v1544 = vrot.slane %v1543, 2
    %v1545 = vadd.f32 %v1543, %v1544
    %v1546 = vrot.slane %v1545, 1
    %v1547 = vadd.f32 %v1545, %v1546
    %vm1548 = vcmask 0
    %1549 = vst.msk [vmem:[#allocation24] sm:$0x1] %vm1548, %v1547
    // Predicated region
    $region146: #{encoder_forward.1} parent=1 // pred_check
      _
    $region147: #{encoder_forward.1} parent=1 // pred_check_branch
      %1551 = sbr.rel (0) target = $region149
    $region148: #{encoder_forward.1} parent=1 // pred_region
      %s1553 = ssub.s32 32, 32
      %1554 = vsyncadd [#allocation4], %s1553
      %s1556 = sshll.u32 [#allocation23], 4
      %s1557 = int_to_ptr.vmem [resolvable:$true] %s1556
      %1559 = dma.vmem_to_hbm [thread:$0]  %s1557, 32, %s23, [#allocation4]
    $region149: #{encoder_forward.1} parent=1 // pred_fallthru
      _
    // Predicated region
    $region150: #{encoder_forward.1} parent=1 // pred_check
      _
    $region151: #{encoder_forward.1} parent=1 // pred_check_branch
      %1561 = sbr.rel (0) target = $region153
    $region152: #{encoder_forward.1} parent=1 // pred_region
      %s1563 = ssub.s32 16, 16
      %1564 = vsyncadd [#allocation25], %s1563
      %s1566 = sshll.u32 [#allocation24], 4
      %s1567 = int_to_ptr.vmem [resolvable:$true] %s1566
      %1569 = dma.vmem_to_hbm [thread:$0]  %s1567, 16, %s24, [#allocation25]
    $region153: #{encoder_forward.1} parent=1 // pred_fallthru
      _
    // Predicated region
    $region154: #{encoder_forward.1} parent=1 // pred_check
      _
    $region155: #{encoder_forward.1} parent=1 // pred_check_branch
      %1571 = sbr.rel (0) target = $region157
    $region156: #{encoder_forward.1} parent=1 // pred_region
      %1572 = dma.done [#allocation4], 32
    $region157: #{encoder_forward.1} parent=1 // pred_fallthru
      _
    // Predicated region
    $region158: #{encoder_forward.1} parent=1 // pred_check
      _
    $region159: #{encoder_forward.1} parent=1 // pred_check_branch
      %1574 = sbr.rel (0) target = $region161
    $region160: #{encoder_forward.1} parent=1 // pred_region
      %1575 = dma.done [#allocation25], 16
    $region161: #{encoder_forward.1} parent=1 // pred_fallthru
      _
    %1576 = vsyncpa [#allocation3], 1
    %1577 = vsyncpa [#allocation6], 1
    %1578 = vsyncpa [#allocation9], 1
    %1579 = vsyncpa [#allocation12], 1
    %1580 = vsyncpa [#allocation15], 1
    %1581 = vsyncpa [#allocation18], 1
    %1582 = vsyncpa [#allocation21], 1
    %1583 = vsyncpa [#allocation4], 1
    %1584 = vsyncpa [#allocation25], 1

</llo_original>
